<compile_context>
chip_gen: v6e
topology: v6e:2x2x1
jax: 0.10.0
libtpu: 0.0.40
codegen_flags: <defaults>
</compile_context>

<pallas_src>
import functools

import jax
import jax.numpy as jnp
from jax.experimental import pallas as pl
from jax.experimental.pallas import tpu as pltpu

EPS = 1e-5  # PyTorch BatchNorm default eps


# ---------------------------------------------------------------------------
# Fused Pallas kernel: conv1+bn1+relu -> dw3x3+bn2 -> (shuffled) conv3+bn3+relu
#                      -> shortcut (+bn) -> residual add
# ---------------------------------------------------------------------------
def _fused_kernel(*refs, TH, W, has_sc):
    if has_sc:
        (xt_ref, xc_ref, xb_ref, w1_ref, b1_ref, w2_ref, b2_ref,
         w3_ref, b3_ref, ws_ref, bs_ref, o_ref, dw_ref) = refs
    else:
        (xt_ref, xc_ref, xb_ref, w1_ref, b1_ref, w2_ref, b2_ref,
         w3_ref, b3_ref, o_ref, dw_ref) = refs

    i = pl.program_id(1)
    nh = pl.num_programs(1)
    # halo rows outside the image are zero-padding of the depthwise input
    top_keep = (i > 0).astype(jnp.float32)
    bot_keep = (i < nh - 1).astype(jnp.float32)

    cin = w1_ref.shape[0]
    mid = w1_ref.shape[1]
    cout = w3_ref.shape[1]

    # ---- conv1 (grouped 1x1 as block-diag matmul, BN1 scale folded) + ReLU --
    xc = xc_ref[0]                                   # (TH, W, Cin)
    xc2d = xc.reshape(TH * W, cin)
    y1 = jnp.dot(xc2d, w1_ref[...], preferred_element_type=jnp.float32)
    y1 = jnp.maximum(y1 + b1_ref[...], 0.0)          # (TH*W, mid)

    # depthwise input buffer (TH+2, W+2, mid), zero border kept in VMEM
    dw_ref[...] = jnp.zeros_like(dw_ref)
    dw_ref[pl.ds(1, TH), pl.ds(1, W), :] = y1.reshape(TH, W, mid)

    # halo rows: conv1 on the single row above / below this tile
    yt = jnp.dot(xt_ref[0, 0], w1_ref[...], preferred_element_type=jnp.float32)
    yt = jnp.maximum(yt + b1_ref[...], 0.0) * top_keep
    dw_ref[pl.ds(0, 1), pl.ds(1, W), :] = yt.reshape(1, W, mid)

    yb = jnp.dot(xb_ref[0, 0], w1_ref[...], preferred_element_type=jnp.float32)
    yb = jnp.maximum(yb + b1_ref[...], 0.0) * bot_keep
    dw_ref[pl.ds(TH + 1, 1), pl.ds(1, W), :] = yb.reshape(1, W, mid)

    # ---- depthwise 3x3 (pad=1) + BN2 (scale folded into the taps) ----------
    xv = dw_ref[...]                                 # (TH+2, W+2, mid)
    acc = jnp.zeros((TH, W, mid), jnp.float32)
    for ky in range(3):
        for kx in range(3):
            acc = acc + xv[ky:ky + TH, kx:kx + W, :] * w2_ref[ky, kx]
    y2 = acc + b2_ref[0]                             # (TH, W, mid)

    # ---- conv3 (grouped 1x1; channel shuffle + BN3 scale folded into W3) ---
    z = jnp.dot(y2.reshape(TH * W, mid), w3_ref[...],
                preferred_element_type=jnp.float32)
    z = jnp.maximum(z + b3_ref[...], 0.0)            # relu BEFORE residual add
                                                     # (matches reference module)

    # ---- shortcut + residual add -------------------------------------------
    if has_sc:
        sc = jnp.dot(xc2d, ws_ref[...], preferred_element_type=jnp.float32)
        sc = sc + bs_ref[...]
    else:
        sc = xc2d.astype(jnp.float32)                # identity (Cin == Cout)

    o_ref[0] = (z + sc).reshape(TH, W, cout).astype(o_ref.dtype)


# ---------------------------------------------------------------------------
# Parameter folding helpers (plain JAX, negligible prep work)
# ---------------------------------------------------------------------------
def _bn_fold(p, name):
    s = p[f'{name}_weight'] / jnp.sqrt(p[f'{name}_running_var'] + EPS)
    return s, p[f'{name}_bias'] - p[f'{name}_running_mean'] * s


def _grouped_1x1_dense(w, groups):
    """torch (Cout, Cin/g, 1, 1) grouped 1x1 weight -> (Cin, Cout) block-diag."""
    cout, cin_g = w.shape[0], w.shape[1]
    cout_g = cout // groups
    wg = w[:, :, 0, 0].reshape(groups, cout_g, cin_g)          # (g, co, ci)
    eye = jnp.eye(groups, dtype=w.dtype)
    dense = jnp.einsum('gh,gba->gahb', eye, wg)                # (g, ci, g, co)
    return dense.reshape(groups * cin_g, groups * cout_g)


def _pick_tile(h, max_rows=8):
    for t in range(min(h, max_rows), 0, -1):
        if h % t == 0:
            return t
    return 1


# ---------------------------------------------------------------------------
# Fused ShuffleNet unit (forward, inference-mode BN)
# ---------------------------------------------------------------------------
def shufflenet_unit(x_nchw, params):
    groups = params['groups']
    mid = params['mid_channels']
    n, cin, h, w = x_nchw.shape
    cout = params['conv3_weight'].shape[0]
    cpg = mid // groups

    # ---- fold BN scales + channel shuffle into the weights ------------------
    s1, b1 = _bn_fold(params, 'bn1')
    w1 = _grouped_1x1_dense(params['conv1_weight'], groups) * s1[None, :]

    s2, b2 = _bn_fold(params, 'bn2')
    w2 = jnp.transpose(params['conv2_weight'][:, 0, :, :], (1, 2, 0)) * s2  # (3,3,mid)

    s3, b3 = _bn_fold(params, 'bn3')
    w3 = _grouped_1x1_dense(params['conv3_weight'], groups)
    idx = jnp.arange(mid)
    inv_perm = (idx % cpg) * groups + (idx // cpg)   # shuffle folded into rows
    w3 = w3[inv_perm] * s3[None, :]

    has_sc = 'shortcut_conv_weight' in params
    if has_sc:
        ss, bs = _bn_fold(params, 'shortcut_bn')
        ws = params['shortcut_conv_weight'][:, :, 0, 0].T * ss[None, :]
    else:
        assert cin == cout, "identity shortcut requires in_channels == out_channels"

    x_nhwc = jnp.transpose(x_nchw, (0, 2, 3, 1))     # (N, H, W, Cin)
    th = _pick_tile(h)
    nh = h // th

    kernel = functools.partial(_fused_kernel, TH=th, W=w, has_sc=has_sc)

    in_specs = [
        # 1-row top halo (clamped at the image border; zeroed in-kernel)
        pl.BlockSpec((1, 1, w, cin),
                     lambda b_, i_: (b_, jnp.maximum(i_ * th - 1, 0), 0, 0)),
        # center row tile
        pl.BlockSpec((1, th, w, cin), lambda b_, i_: (b_, i_, 0, 0)),
        # 1-row bottom halo
        pl.BlockSpec((1, 1, w, cin),
                     lambda b_, i_: (b_, jnp.minimum(i_ * th + th, h - 1), 0, 0)),
        pl.BlockSpec((cin, mid), lambda b_, i_: (0, 0)),      # w1 (scaled)
        pl.BlockSpec((1, mid), lambda b_, i_: (0, 0)),        # b1
        pl.BlockSpec((3, 3, mid), lambda b_, i_: (0, 0, 0)),  # w2 (scaled)
        pl.BlockSpec((1, mid), lambda b_, i_: (0, 0)),        # b2
        pl.BlockSpec((mid, cout), lambda b_, i_: (0, 0)),     # w3 (shuffled+scaled)
        pl.BlockSpec((1, cout), lambda b_, i_: (0, 0)),       # b3
    ]
    args = [x_nhwc, x_nhwc, x_nhwc, w1, b1.reshape(1, mid), w2,
            b2.reshape(1, mid), w3, b3.reshape(1, cout)]
    if has_sc:
        in_specs += [pl.BlockSpec((cin, cout), lambda b_, i_: (0, 0)),
                     pl.BlockSpec((1, cout), lambda b_, i_: (0, 0))]
        args += [ws, bs.reshape(1, cout)]

    out_nhwc = pl.pallas_call(
        kernel,
        out_shape=jax.ShapeDtypeStruct((n, h, w, cout), x_nchw.dtype),
        grid=(n, nh),
        in_specs=in_specs,
        out_specs=pl.BlockSpec((1, th, w, cout), lambda b_, i_: (b_, i_, 0, 0)),
        scratch_shapes=[pltpu.VMEM((th + 2, w + 2, mid), jnp.float32)],
        compiler_params=pltpu.CompilerParams(
            dimension_semantics=("parallel", "parallel"),
            vmem_limit_bytes=32 * 1024 * 1024),
    )(*args)

    return jnp.transpose(out_nhwc, (0, 3, 1, 2))     # back to NCHW


# ---------------------------------------------------------------------------
# Pure-JAX reference (mirrors the PyTorch module_fn, eval-mode BN)
# ---------------------------------------------------------------------------
def _reference(x, params):
    groups = params['groups']
    mid = params['mid_channels']

    def conv(x_, w_, fg, pad):
        return jax.lax.conv_general_dilated(
            x_, w_, window_strides=(1, 1), padding=[(pad, pad), (pad, pad)],
            dimension_numbers=('NCHW', 'OIHW', 'NCHW'),
            feature_group_count=fg, precision=jax.lax.Precision.HIGHEST)

    def bn(x_, name):
        s = params[f'{name}_weight'] / jnp.sqrt(params[f'{name}_running_var'] + EPS)
        b = params[f'{name}_bias'] - params[f'{name}_running_mean'] * s
        return x_ * s[None, :, None, None] + b[None, :, None, None]

    out = jnp.maximum(bn(conv(x, params['conv1_weight'], groups, 0), 'bn1'), 0.0)
    out = bn(conv(out, params['conv2_weight'], mid, 1), 'bn2')
    nb, c, h, w = out.shape
    out = out.reshape(nb, groups, c // groups, h, w)
    out = jnp.transpose(out, (0, 2, 1, 3, 4)).reshape(nb, c, h, w)
    out = jnp.maximum(bn(conv(out, params['conv3_weight'], groups, 0), 'bn3'), 0.0)
    if 'shortcut_conv_weight' in params:
        sc = bn(conv(x, params['shortcut_conv_weight'], 1, 0), 'shortcut_bn')
    else:
        sc = x
    return out + sc


# ---------------------------------------------------------------------------
# Deterministic parameter construction (mirrors Model.__init__ shapes)
# ---------------------------------------------------------------------------
def make_params(key, in_channels, out_channels, groups):
    assert out_channels % 4 == 0
    mid = out_channels // 4
    assert in_channels % groups == 0 and mid % groups == 0
    keys = iter(jax.random.split(key, 24))

    def nrm(shape, s=0.25):
        return s * jax.random.normal(next(keys), shape, jnp.float32)

    p = {
        'groups': groups,
        'mid_channels': mid,
        'conv1_weight': nrm((mid, in_channels // groups, 1, 1)),
        'conv2_weight': nrm((mid, 1, 3, 3)),
        'conv3_weight': nrm((out_channels, mid // groups, 1, 1)),
    }

    def add_bn(name, c):
        p[f'{name}_weight'] = 1.0 + 0.1 * jax.random.normal(next(keys), (c,), jnp.float32)
        p[f'{name}_bias'] = 0.1 * jax.random.normal(next(keys), (c,), jnp.float32)
        p[f'{name}_running_mean'] = 0.1 * jax.random.normal(next(keys), (c,), jnp.float32)
        p[f'{name}_running_var'] = 0.5 + jax.random.uniform(next(keys), (c,), jnp.float32)

    add_bn('bn1', mid)
    add_bn('bn2', mid)
    add_bn('bn3', out_channels)
    if in_channels != out_channels:
        p['shortcut_conv_weight'] = nrm((out_channels, in_channels, 1, 1))
        add_bn('shortcut_bn', out_channels)
    return p


if __name__ == "__main__":
    key = jax.random.PRNGKey(0)
    kx1, kp1, kx2, kp2 = jax.random.split(key, 4)

    # Config A: in_channels != out_channels -> 1x1-conv shortcut (as in the spec)
    batch, cin, cout, grp, hh, ww = 2, 24, 48, 3, 16, 16
    x1 = jax.random.normal(kx1, (batch, cin, hh, ww), jnp.float32)
    p1 = make_params(kp1, cin, cout, grp)
    o1 = jax.block_until_ready(jax.jit(lambda t: shufflenet_unit(t, p1))(x1))
    assert o1.shape == (batch, cout, hh, ww)
    r1 = jax.block_until_ready(jax.jit(lambda t: _reference(t, p1))(x1))
    err1 = float(jnp.max(jnp.abs(o1 - r1)))
    assert err1 < 5e-2, f"config A mismatch: max abs err {err1}"

    # Config B: in_channels == out_channels -> identity shortcut
    x2 = jax.random.normal(kx2, (batch, cout, hh, ww), jnp.float32)
    p2 = make_params(kp2, cout, cout, grp)
    o2 = jax.block_until_ready(jax.jit(lambda t: shufflenet_unit(t, p2))(x2))
    assert o2.shape == (batch, cout, hh, ww)
    r2 = jax.block_until_ready(jax.jit(lambda t: _reference(t, p2))(x2))
    err2 = float(jnp.max(jnp.abs(o2 - r2)))
    assert err2 < 5e-2, f"config B mismatch: max abs err {err2}"

    print("KERNEL_OK")
</pallas_src>

<mosaic_0001>
module attributes {stable_mosaic.version = 11 : i64} {
  func.func @_fused_kernel(%arg0: i32, %arg1: i32, %arg2: memref<1x1x16x24xf32, #tpu.memory_space<vmem>>, %arg3: memref<1x8x16x24xf32, #tpu.memory_space<vmem>>, %arg4: memref<1x1x16x24xf32, #tpu.memory_space<vmem>>, %arg5: memref<24x12xf32, #tpu.memory_space<vmem>>, %arg6: memref<1x12xf32, #tpu.memory_space<vmem>>, %arg7: memref<3x3x12xf32, #tpu.memory_space<vmem>>, %arg8: memref<1x12xf32, #tpu.memory_space<vmem>>, %arg9: memref<12x48xf32, #tpu.memory_space<vmem>>, %arg10: memref<1x48xf32, #tpu.memory_space<vmem>>, %arg11: memref<24x48xf32, #tpu.memory_space<vmem>>, %arg12: memref<1x48xf32, #tpu.memory_space<vmem>>, %arg13: memref<1x8x16x48xf32, #tpu.memory_space<vmem>>, %arg14: memref<10x18x12xf32, #tpu.memory_space<vmem>>) attributes {dimension_semantics = [#tpu.dimension_semantics<parallel>, #tpu.dimension_semantics<parallel>], iteration_bounds = array<i64: 2, 2>, scalar_prefetch = 0 : i64, scratch_operands = 1 : i64, tpu.core_type = #tpu.core_type<tc>, window_params = [{transform_indices = @transform_0, window_bounds = array<i64: 1, 1, 16, 24>}, {transform_indices = @transform_1, window_bounds = array<i64: 1, 8, 16, 24>}, {transform_indices = @transform_2, window_bounds = array<i64: 1, 1, 16, 24>}, {pipeline_mode = #tpu.pipeline_mode<synchronous>, transform_indices = @transform_3, window_bounds = array<i64: 24, 12>}, {pipeline_mode = #tpu.pipeline_mode<synchronous>, transform_indices = @transform_4, window_bounds = array<i64: 1, 12>}, {pipeline_mode = #tpu.pipeline_mode<synchronous>, transform_indices = @transform_5, window_bounds = array<i64: 3, 3, 12>}, {pipeline_mode = #tpu.pipeline_mode<synchronous>, transform_indices = @transform_6, window_bounds = array<i64: 1, 12>}, {pipeline_mode = #tpu.pipeline_mode<synchronous>, transform_indices = @transform_7, window_bounds = array<i64: 12, 48>}, {pipeline_mode = #tpu.pipeline_mode<synchronous>, transform_indices = @transform_8, window_bounds = array<i64: 1, 48>}, {pipeline_mode = #tpu.pipeline_mode<synchronous>, transform_indices = @transform_9, window_bounds = array<i64: 24, 48>}, {pipeline_mode = #tpu.pipeline_mode<synchronous>, transform_indices = @transform_10, window_bounds = array<i64: 1, 48>}, {transform_indices = @transform_11, window_bounds = array<i64: 1, 8, 16, 48>}]} {
    %c0_i32 = arith.constant 0 : i32
    %0 = arith.cmpi sgt, %arg1, %c0_i32 : i32
    %1 = arith.extui %0 : i1 to i32
    %2 = arith.sitofp %1 : i32 to f32
    %c1_i32 = arith.constant 1 : i32
    %3 = arith.cmpi slt, %arg1, %c1_i32 : i32
    %4 = arith.extui %3 : i1 to i32
    %5 = arith.sitofp %4 : i32 to f32
    %c0 = arith.constant 0 : index
    %c0_0 = arith.constant 0 : index
    %c0_1 = arith.constant 0 : index
    %c0_2 = arith.constant 0 : index
    %6 = vector.load %arg3[%c0, %c0_0, %c0_1, %c0_2] : memref<1x8x16x24xf32, #tpu.memory_space<vmem>>, vector<1x8x16x24xf32>
    %7 = vector.shape_cast %6 : vector<1x8x16x24xf32> to vector<8x16x24xf32>
    %8 = vector.shape_cast %7 : vector<8x16x24xf32> to vector<128x24xf32>
    %c0_3 = arith.constant 0 : index
    %c0_4 = arith.constant 0 : index
    %9 = vector.load %arg5[%c0_3, %c0_4] : memref<24x12xf32, #tpu.memory_space<vmem>>, vector<24x12xf32>
    %cst = arith.constant dense<0.000000e+00> : vector<128x12xf32>
    %10 = tpu.matmul %8, %9, %cst {dimension_numbers = #tpu.dot_dimension_numbers<[1], [0], [0], [1], [0, 0, 1, 1], [], []>} : vector<128x24xf32>, vector<24x12xf32>, vector<128x12xf32> -> vector<128x12xf32>
    %c0_5 = arith.constant 0 : index
    %c0_6 = arith.constant 0 : index
    %11 = vector.load %arg6[%c0_5, %c0_6] : memref<1x12xf32, #tpu.memory_space<vmem>>, vector<1x12xf32>
    %12 = vector.broadcast %11 : vector<1x12xf32> to vector<128x12xf32>
    %13 = arith.addf %10, %12 : vector<128x12xf32>
    %cst_7 = arith.constant 0.000000e+00 : f32
    %14 = vector.broadcast %cst_7 : f32 to vector<128x12xf32>
    %15 = arith.maximumf %13, %14 : vector<128x12xf32>
    %cst_8 = arith.constant 0.000000e+00 : f32
    %16 = vector.broadcast %cst_8 : f32 to vector<10x18x12xf32>
    %c0_9 = arith.constant 0 : index
    %c0_10 = arith.constant 0 : index
    %c0_11 = arith.constant 0 : index
    %17 = vector.load %arg14[%c0_9, %c0_10, %c0_11] : memref<10x18x12xf32, #tpu.memory_space<vmem>>, vector<10x18x12xf32>
    tpu.vector_store %arg14[%c0_9, %c0_10, %c0_11], %16 {strides = array<i32>} : memref<10x18x12xf32, #tpu.memory_space<vmem>>, vector<10x18x12xf32>,
    %18 = vector.shape_cast %15 : vector<128x12xf32> to vector<8x16x12xf32>
    %c1 = arith.constant 1 : index
    %c1_12 = arith.constant 1 : index
    %c0_13 = arith.constant 0 : index
    %19 = vector.load %arg14[%c1, %c1_12, %c0_13] : memref<10x18x12xf32, #tpu.memory_space<vmem>>, vector<8x16x12xf32>
    tpu.vector_store %arg14[%c1, %c1_12, %c0_13], %18 {strides = array<i32>} : memref<10x18x12xf32, #tpu.memory_space<vmem>>, vector<8x16x12xf32>,
    %c0_14 = arith.constant 0 : index
    %c0_15 = arith.constant 0 : index
    %c0_16 = arith.constant 0 : index
    %c0_17 = arith.constant 0 : index
    %20 = vector.load %arg2[%c0_14, %c0_15, %c0_16, %c0_17] : memref<1x1x16x24xf32, #tpu.memory_space<vmem>>, vector<1x1x16x24xf32>
    %21 = vector.shape_cast %20 : vector<1x1x16x24xf32> to vector<16x24xf32>
    %c0_18 = arith.constant 0 : index
    %c0_19 = arith.constant 0 : index
    %22 = vector.load %arg5[%c0_18, %c0_19] : memref<24x12xf32, #tpu.memory_space<vmem>>, vector<24x12xf32>
    %cst_20 = arith.constant dense<0.000000e+00> : vector<16x12xf32>
    %23 = tpu.matmul %21, %22, %cst_20 {dimension_numbers = #tpu.dot_dimension_numbers<[1], [0], [0], [1], [0, 0, 1, 1], [], []>} : vector<16x24xf32>, vector<24x12xf32>, vector<16x12xf32> -> vector<16x12xf32>
    %c0_21 = arith.constant 0 : index
    %c0_22 = arith.constant 0 : index
    %24 = vector.load %arg6[%c0_21, %c0_22] : memref<1x12xf32, #tpu.memory_space<vmem>>, vector<1x12xf32>
    %25 = vector.broadcast %24 : vector<1x12xf32> to vector<16x12xf32>
    %26 = arith.addf %23, %25 : vector<16x12xf32>
    %cst_23 = arith.constant 0.000000e+00 : f32
    %27 = vector.broadcast %cst_23 : f32 to vector<16x12xf32>
    %28 = arith.maximumf %26, %27 : vector<16x12xf32>
    %29 = vector.broadcast %2 : f32 to vector<16x12xf32>
    %30 = arith.mulf %28, %29 : vector<16x12xf32>
    %31 = vector.shape_cast %30 : vector<16x12xf32> to vector<1x16x12xf32>
    %c0_24 = arith.constant 0 : index
    %c1_25 = arith.constant 1 : index
    %c0_26 = arith.constant 0 : index
    %32 = vector.load %arg14[%c0_24, %c1_25, %c0_26] : memref<10x18x12xf32, #tpu.memory_space<vmem>>, vector<1x16x12xf32>
    tpu.vector_store %arg14[%c0_24, %c1_25, %c0_26], %31 {strides = array<i32>} : memref<10x18x12xf32, #tpu.memory_space<vmem>>, vector<1x16x12xf32>,
    %c0_27 = arith.constant 0 : index
    %c0_28 = arith.constant 0 : index
    %c0_29 = arith.constant 0 : index
    %c0_30 = arith.constant 0 : index
    %33 = vector.load %arg4[%c0_27, %c0_28, %c0_29, %c0_30] : memref<1x1x16x24xf32, #tpu.memory_space<vmem>>, vector<1x1x16x24xf32>
    %34 = vector.shape_cast %33 : vector<1x1x16x24xf32> to vector<16x24xf32>
    %c0_31 = arith.constant 0 : index
    %c0_32 = arith.constant 0 : index
    %35 = vector.load %arg5[%c0_31, %c0_32] : memref<24x12xf32, #tpu.memory_space<vmem>>, vector<24x12xf32>
    %cst_33 = arith.constant dense<0.000000e+00> : vector<16x12xf32>
    %36 = tpu.matmul %34, %35, %cst_33 {dimension_numbers = #tpu.dot_dimension_numbers<[1], [0], [0], [1], [0, 0, 1, 1], [], []>} : vector<16x24xf32>, vector<24x12xf32>, vector<16x12xf32> -> vector<16x12xf32>
    %c0_34 = arith.constant 0 : index
    %c0_35 = arith.constant 0 : index
    %37 = vector.load %arg6[%c0_34, %c0_35] : memref<1x12xf32, #tpu.memory_space<vmem>>, vector<1x12xf32>
    %38 = vector.broadcast %37 : vector<1x12xf32> to vector<16x12xf32>
    %39 = arith.addf %36, %38 : vector<16x12xf32>
    %cst_36 = arith.constant 0.000000e+00 : f32
    %40 = vector.broadcast %cst_36 : f32 to vector<16x12xf32>
    %41 = arith.maximumf %39, %40 : vector<16x12xf32>
    %42 = vector.broadcast %5 : f32 to vector<16x12xf32>
    %43 = arith.mulf %41, %42 : vector<16x12xf32>
    %44 = vector.shape_cast %43 : vector<16x12xf32> to vector<1x16x12xf32>
    %c9 = arith.constant 9 : index
    %c1_37 = arith.constant 1 : index
    %c0_38 = arith.constant 0 : index
    %45 = vector.load %arg14[%c9, %c1_37, %c0_38] : memref<10x18x12xf32, #tpu.memory_space<vmem>>, vector<1x16x12xf32>
    tpu.vector_store %arg14[%c9, %c1_37, %c0_38], %44 {strides = array<i32>} : memref<10x18x12xf32, #tpu.memory_space<vmem>>, vector<1x16x12xf32>,
    %c0_39 = arith.constant 0 : index
    %c0_40 = arith.constant 0 : index
    %c0_41 = arith.constant 0 : index
    %46 = vector.load %arg14[%c0_39, %c0_40, %c0_41] : memref<10x18x12xf32, #tpu.memory_space<vmem>>, vector<10x18x12xf32>
    %cst_42 = arith.constant 0.000000e+00 : f32
    %47 = vector.broadcast %cst_42 : f32 to vector<8x16x12xf32>
    %48 = vector.extract_strided_slice %46 {offsets = [0, 0, 0], sizes = [8, 16, 12], strides = [1, 1, 1]} : vector<10x18x12xf32> to vector<8x16x12xf32>
    %c0_43 = arith.constant 0 : index
    %c0_44 = arith.constant 0 : index
    %c0_45 = arith.constant 0 : index
    %49 = vector.load %arg7[%c0_43, %c0_44, %c0_45] : memref<3x3x12xf32, #tpu.memory_space<vmem>>, vector<1x1x12xf32>
    %50 = vector.shape_cast %49 : vector<1x1x12xf32> to vector<12xf32>
    %51 = vector.shape_cast %50 : vector<12xf32> to vector<1x1x12xf32>
    %52 = vector.broadcast %51 : vector<1x1x12xf32> to vector<8x16x12xf32>
    %53 = arith.mulf %48, %52 : vector<8x16x12xf32>
    %54 = arith.addf %47, %53 : vector<8x16x12xf32>
    %55 = vector.extract_strided_slice %46 {offsets = [0, 1, 0], sizes = [8, 16, 12], strides = [1, 1, 1]} : vector<10x18x12xf32> to vector<8x16x12xf32>
    %c0_46 = arith.constant 0 : index
    %c1_47 = arith.constant 1 : index
    %c0_48 = arith.constant 0 : index
    %56 = vector.load %arg7[%c0_46, %c1_47, %c0_48] : memref<3x3x12xf32, #tpu.memory_space<vmem>>, vector<1x1x12xf32>
    %57 = vector.shape_cast %56 : vector<1x1x12xf32> to vector<12xf32>
    %58 = vector.shape_cast %57 : vector<12xf32> to vector<1x1x12xf32>
    %59 = vector.broadcast %58 : vector<1x1x12xf32> to vector<8x16x12xf32>
    %60 = arith.mulf %55, %59 : vector<8x16x12xf32>
    %61 = arith.addf %54, %60 : vector<8x16x12xf32>
    %62 = vector.extract_strided_slice %46 {offsets = [0, 2, 0], sizes = [8, 16, 12], strides = [1, 1, 1]} : vector<10x18x12xf32> to vector<8x16x12xf32>
    %c0_49 = arith.constant 0 : index
    %c2 = arith.constant 2 : index
    %c0_50 = arith.constant 0 : index
    %63 = vector.load %arg7[%c0_49, %c2, %c0_50] : memref<3x3x12xf32, #tpu.memory_space<vmem>>, vector<1x1x12xf32>
    %64 = vector.shape_cast %63 : vector<1x1x12xf32> to vector<12xf32>
    %65 = vector.shape_cast %64 : vector<12xf32> to vector<1x1x12xf32>
    %66 = vector.broadcast %65 : vector<1x1x12xf32> to vector<8x16x12xf32>
    %67 = arith.mulf %62, %66 : vector<8x16x12xf32>
    %68 = arith.addf %61, %67 : vector<8x16x12xf32>
    %69 = vector.extract_strided_slice %46 {offsets = [1, 0, 0], sizes = [8, 16, 12], strides = [1, 1, 1]} : vector<10x18x12xf32> to vector<8x16x12xf32>
    %c1_51 = arith.constant 1 : index
    %c0_52 = arith.constant 0 : index
    %c0_53 = arith.constant 0 : index
    %70 = vector.load %arg7[%c1_51, %c0_52, %c0_53] : memref<3x3x12xf32, #tpu.memory_space<vmem>>, vector<1x1x12xf32>
    %71 = vector.shape_cast %70 : vector<1x1x12xf32> to vector<12xf32>
    %72 = vector.shape_cast %71 : vector<12xf32> to vector<1x1x12xf32>
    %73 = vector.broadcast %72 : vector<1x1x12xf32> to vector<8x16x12xf32>
    %74 = arith.mulf %69, %73 : vector<8x16x12xf32>
    %75 = arith.addf %68, %74 : vector<8x16x12xf32>
    %76 = vector.extract_strided_slice %46 {offsets = [1, 1, 0], sizes = [8, 16, 12], strides = [1, 1, 1]} : vector<10x18x12xf32> to vector<8x16x12xf32>
    %c1_54 = arith.constant 1 : index
    %c1_55 = arith.constant 1 : index
    %c0_56 = arith.constant 0 : index
    %77 = vector.load %arg7[%c1_54, %c1_55, %c0_56] : memref<3x3x12xf32, #tpu.memory_space<vmem>>, vector<1x1x12xf32>
    %78 = vector.shape_cast %77 : vector<1x1x12xf32> to vector<12xf32>
    %79 = vector.shape_cast %78 : vector<12xf32> to vector<1x1x12xf32>
    %80 = vector.broadcast %79 : vector<1x1x12xf32> to vector<8x16x12xf32>
    %81 = arith.mulf %76, %80 : vector<8x16x12xf32>
    %82 = arith.addf %75, %81 : vector<8x16x12xf32>
    %83 = vector.extract_strided_slice %46 {offsets = [1, 2, 0], sizes = [8, 16, 12], strides = [1, 1, 1]} : vector<10x18x12xf32> to vector<8x16x12xf32>
    %c1_57 = arith.constant 1 : index
    %c2_58 = arith.constant 2 : index
    %c0_59 = arith.constant 0 : index
    %84 = vector.load %arg7[%c1_57, %c2_58, %c0_59] : memref<3x3x12xf32, #tpu.memory_space<vmem>>, vector<1x1x12xf32>
    %85 = vector.shape_cast %84 : vector<1x1x12xf32> to vector<12xf32>
    %86 = vector.shape_cast %85 : vector<12xf32> to vector<1x1x12xf32>
    %87 = vector.broadcast %86 : vector<1x1x12xf32> to vector<8x16x12xf32>
    %88 = arith.mulf %83, %87 : vector<8x16x12xf32>
    %89 = arith.addf %82, %88 : vector<8x16x12xf32>
    %90 = vector.extract_strided_slice %46 {offsets = [2, 0, 0], sizes = [8, 16, 12], strides = [1, 1, 1]} : vector<10x18x12xf32> to vector<8x16x12xf32>
    %c2_60 = arith.constant 2 : index
    %c0_61 = arith.constant 0 : index
    %c0_62 = arith.constant 0 : index
    %91 = vector.load %arg7[%c2_60, %c0_61, %c0_62] : memref<3x3x12xf32, #tpu.memory_space<vmem>>, vector<1x1x12xf32>
    %92 = vector.shape_cast %91 : vector<1x1x12xf32> to vector<12xf32>
    %93 = vector.shape_cast %92 : vector<12xf32> to vector<1x1x12xf32>
    %94 = vector.broadcast %93 : vector<1x1x12xf32> to vector<8x16x12xf32>
    %95 = arith.mulf %90, %94 : vector<8x16x12xf32>
    %96 = arith.addf %89, %95 : vector<8x16x12xf32>
    %97 = vector.extract_strided_slice %46 {offsets = [2, 1, 0], sizes = [8, 16, 12], strides = [1, 1, 1]} : vector<10x18x12xf32> to vector<8x16x12xf32>
    %c2_63 = arith.constant 2 : index
    %c1_64 = arith.constant 1 : index
    %c0_65 = arith.constant 0 : index
    %98 = vector.load %arg7[%c2_63, %c1_64, %c0_65] : memref<3x3x12xf32, #tpu.memory_space<vmem>>, vector<1x1x12xf32>
    %99 = vector.shape_cast %98 : vector<1x1x12xf32> to vector<12xf32>
    %100 = vector.shape_cast %99 : vector<12xf32> to vector<1x1x12xf32>
    %101 = vector.broadcast %100 : vector<1x1x12xf32> to vector<8x16x12xf32>
    %102 = arith.mulf %97, %101 : vector<8x16x12xf32>
    %103 = arith.addf %96, %102 : vector<8x16x12xf32>
    %104 = vector.extract_strided_slice %46 {offsets = [2, 2, 0], sizes = [8, 16, 12], strides = [1, 1, 1]} : vector<10x18x12xf32> to vector<8x16x12xf32>
    %c2_66 = arith.constant 2 : index
    %c2_67 = arith.constant 2 : index
    %c0_68 = arith.constant 0 : index
    %105 = vector.load %arg7[%c2_66, %c2_67, %c0_68] : memref<3x3x12xf32, #tpu.memory_space<vmem>>, vector<1x1x12xf32>
    %106 = vector.shape_cast %105 : vector<1x1x12xf32> to vector<12xf32>
    %107 = vector.shape_cast %106 : vector<12xf32> to vector<1x1x12xf32>
    %108 = vector.broadcast %107 : vector<1x1x12xf32> to vector<8x16x12xf32>
    %109 = arith.mulf %104, %108 : vector<8x16x12xf32>
    %110 = arith.addf %103, %109 : vector<8x16x12xf32>
    %c0_69 = arith.constant 0 : index
    %c0_70 = arith.constant 0 : index
    %111 = vector.load %arg8[%c0_69, %c0_70] : memref<1x12xf32, #tpu.memory_space<vmem>>, vector<1x12xf32>
    %112 = vector.shape_cast %111 : vector<1x12xf32> to vector<12xf32>
    %113 = vector.shape_cast %112 : vector<12xf32> to vector<1x1x12xf32>
    %114 = vector.broadcast %113 : vector<1x1x12xf32> to vector<8x16x12xf32>
    %115 = arith.addf %110, %114 : vector<8x16x12xf32>
    %116 = vector.shape_cast %115 : vector<8x16x12xf32> to vector<128x12xf32>
    %c0_71 = arith.constant 0 : index
    %c0_72 = arith.constant 0 : index
    %117 = vector.load %arg9[%c0_71, %c0_72] : memref<12x48xf32, #tpu.memory_space<vmem>>, vector<12x48xf32>
    %cst_73 = arith.constant dense<0.000000e+00> : vector<128x48xf32>
    %118 = tpu.matmul %116, %117, %cst_73 {dimension_numbers = #tpu.dot_dimension_numbers<[1], [0], [0], [1], [0, 0, 1, 1], [], []>} : vector<128x12xf32>, vector<12x48xf32>, vector<128x48xf32> -> vector<128x48xf32>
    %c0_74 = arith.constant 0 : index
    %c0_75 = arith.constant 0 : index
    %119 = vector.load %arg10[%c0_74, %c0_75] : memref<1x48xf32, #tpu.memory_space<vmem>>, vector<1x48xf32>
    %120 = vector.broadcast %119 : vector<1x48xf32> to vector<128x48xf32>
    %121 = arith.addf %118, %120 : vector<128x48xf32>
    %cst_76 = arith.constant 0.000000e+00 : f32
    %122 = vector.broadcast %cst_76 : f32 to vector<128x48xf32>
    %123 = arith.maximumf %121, %122 : vector<128x48xf32>
    %c0_77 = arith.constant 0 : index
    %c0_78 = arith.constant 0 : index
    %124 = vector.load %arg11[%c0_77, %c0_78] : memref<24x48xf32, #tpu.memory_space<vmem>>, vector<24x48xf32>
    %cst_79 = arith.constant dense<0.000000e+00> : vector<128x48xf32>
    %125 = tpu.matmul %8, %124, %cst_79 {dimension_numbers = #tpu.dot_dimension_numbers<[1], [0], [0], [1], [0, 0, 1, 1], [], []>} : vector<128x24xf32>, vector<24x48xf32>, vector<128x48xf32> -> vector<128x48xf32>
    %c0_80 = arith.constant 0 : index
    %c0_81 = arith.constant 0 : index
    %126 = vector.load %arg12[%c0_80, %c0_81] : memref<1x48xf32, #tpu.memory_space<vmem>>, vector<1x48xf32>
    %127 = vector.broadcast %126 : vector<1x48xf32> to vector<128x48xf32>
    %128 = arith.addf %125, %127 : vector<128x48xf32>
    %129 = arith.addf %123, %128 : vector<128x48xf32>
    %130 = vector.shape_cast %129 : vector<128x48xf32> to vector<8x16x48xf32>
    %c0_82 = arith.constant 0 : index
    %c0_83 = arith.constant 0 : index
    %c0_84 = arith.constant 0 : index
    %c0_85 = arith.constant 0 : index
    %131 = vector.load %arg13[%c0_82, %c0_83, %c0_84, %c0_85] : memref<1x8x16x48xf32, #tpu.memory_space<vmem>>, vector<1x8x16x48xf32>
    %132 = vector.shape_cast %131 : vector<1x8x16x48xf32> to vector<8x16x48xf32>
    %133 = vector.shape_cast %130 : vector<8x16x48xf32> to vector<1x8x16x48xf32>
    tpu.vector_store %arg13[%c0_82, %c0_83, %c0_84, %c0_85], %133 {strides = array<i32>} : memref<1x8x16x48xf32, #tpu.memory_space<vmem>>, vector<1x8x16x48xf32>,
    return
  }
  func.func @transform_0(%arg0: i32, %arg1: i32) -> (i32, i32, i32, i32) {
    %c8_i32 = arith.constant 8 : i32
    %0 = arith.muli %arg1, %c8_i32 : i32
    %c1_i32 = arith.constant 1 : i32
    %1 = arith.subi %0, %c1_i32 : i32
    %c0_i32 = arith.constant 0 : i32
    %2 = arith.maxsi %1, %c0_i32 : i32
    %c0_i32_0 = arith.constant 0 : i32
    %c0_i32_1 = arith.constant 0 : i32
    %c0_i32_2 = arith.constant 0 : i32
    return %arg0, %2, %c0_i32_0, %c0_i32_1 : i32, i32, i32, i32
  }
  func.func @transform_1(%arg0: i32, %arg1: i32) -> (i32, i32, i32, i32) {
    %c0_i32 = arith.constant 0 : i32
    %c0_i32_0 = arith.constant 0 : i32
    %c0_i32_1 = arith.constant 0 : i32
    return %arg0, %arg1, %c0_i32, %c0_i32_0 : i32, i32, i32, i32
  }
  func.func @transform_2(%arg0: i32, %arg1: i32) -> (i32, i32, i32, i32) {
    %c8_i32 = arith.constant 8 : i32
    %0 = arith.muli %arg1, %c8_i32 : i32
    %c8_i32_0 = arith.constant 8 : i32
    %1 = arith.addi %0, %c8_i32_0 : i32
    %c15_i32 = arith.constant 15 : i32
    %2 = arith.minsi %1, %c15_i32 : i32
    %c0_i32 = arith.constant 0 : i32
    %c0_i32_1 = arith.constant 0 : i32
    %c0_i32_2 = arith.constant 0 : i32
    return %arg0, %2, %c0_i32, %c0_i32_1 : i32, i32, i32, i32
  }
  func.func @transform_3(%arg0: i32, %arg1: i32) -> (i32, i32) {
    %c0_i32 = arith.constant 0 : i32
    %c0_i32_0 = arith.constant 0 : i32
    %c0_i32_1 = arith.constant 0 : i32
    return %c0_i32, %c0_i32_0 : i32, i32
  }
  func.func @transform_4(%arg0: i32, %arg1: i32) -> (i32, i32) {
    %c0_i32 = arith.constant 0 : i32
    %c0_i32_0 = arith.constant 0 : i32
    %c0_i32_1 = arith.constant 0 : i32
    return %c0_i32, %c0_i32_0 : i32, i32
  }
  func.func @transform_5(%arg0: i32, %arg1: i32) -> (i32, i32, i32) {
    %c0_i32 = arith.constant 0 : i32
    %c0_i32_0 = arith.constant 0 : i32
    %c0_i32_1 = arith.constant 0 : i32
    %c0_i32_2 = arith.constant 0 : i32
    return %c0_i32, %c0_i32_0, %c0_i32_1 : i32, i32, i32
  }
  func.func @transform_6(%arg0: i32, %arg1: i32) -> (i32, i32) {
    %c0_i32 = arith.constant 0 : i32
    %c0_i32_0 = arith.constant 0 : i32
    %c0_i32_1 = arith.constant 0 : i32
    return %c0_i32, %c0_i32_0 : i32, i32
  }
  func.func @transform_7(%arg0: i32, %arg1: i32) -> (i32, i32) {
    %c0_i32 = arith.constant 0 : i32
    %c0_i32_0 = arith.constant 0 : i32
    %c0_i32_1 = arith.constant 0 : i32
    return %c0_i32, %c0_i32_0 : i32, i32
  }
  func.func @transform_8(%arg0: i32, %arg1: i32) -> (i32, i32) {
    %c0_i32 = arith.constant 0 : i32
    %c0_i32_0 = arith.constant 0 : i32
    %c0_i32_1 = arith.constant 0 : i32
    return %c0_i32, %c0_i32_0 : i32, i32
  }
  func.func @transform_9(%arg0: i32, %arg1: i32) -> (i32, i32) {
    %c0_i32 = arith.constant 0 : i32
    %c0_i32_0 = arith.constant 0 : i32
    %c0_i32_1 = arith.constant 0 : i32
    return %c0_i32, %c0_i32_0 : i32, i32
  }
  func.func @transform_10(%arg0: i32, %arg1: i32) -> (i32, i32) {
    %c0_i32 = arith.constant 0 : i32
    %c0_i32_0 = arith.constant 0 : i32
    %c0_i32_1 = arith.constant 0 : i32
    return %c0_i32, %c0_i32_0 : i32, i32
  }
  func.func @transform_11(%arg0: i32, %arg1: i32) -> (i32, i32, i32, i32) {
    %c0_i32 = arith.constant 0 : i32
    %c0_i32_0 = arith.constant 0 : i32
    %c0_i32_1 = arith.constant 0 : i32
    return %arg0, %arg1, %c0_i32, %c0_i32_0 : i32, i32, i32, i32
  }
}

</mosaic_0001>

<llo_original>
// kernel: _lambda_.1
$region0: #{_lambda_.1}
  #allocation0 [shape = 'u32[]', space=smem, size = 0x4, offset = 0x4, fixed_abs, tag = 'smem constant byte address 0x4 - core index']
  #allocation1 [shape = 'u32[144,128]{1,0:T(1,128)}', space=vmem, size = 0x12000, scoped, tag = 'internal scratch']
  #allocation2 [shape = 'f32[10,18,12]{2,1,0:T(8,128)}', space=vmem, size = 0x1e000, scoped, tag = 'scratch operand']
  %s0 = inlined_call_operand.vmem [shape: f32[2,16,16,24], index: 0, kind: input, shape index: {}, may-alias: {0,1,2}]
  %s1 = inlined_call_operand.vmem [shape: f32[2,16,16,24], index: 1, kind: input, shape index: {}, may-alias: {0,1,2}]
  %s2 = inlined_call_operand.vmem [shape: f32[2,16,16,24], index: 2, kind: input, shape index: {}, may-alias: {0,1,2}]
  %s3 = inlined_call_operand.vmem [shape: f32[24,12], index: 3, kind: input, shape index: {}]
  %s4 = inlined_call_operand.hbm [shape: f32[1,12], index: 4, kind: input, shape index: {}]
  %s5 = inlined_call_operand.hbm [shape: f32[3,3,12], index: 5, kind: input, shape index: {}]
  %s6 = inlined_call_operand.hbm [shape: f32[1,12], index: 6, kind: input, shape index: {}]
  %s7 = inlined_call_operand.vmem [shape: f32[12,48], index: 7, kind: input, shape index: {}]
  %s8 = inlined_call_operand.hbm [shape: f32[1,48], index: 8, kind: input, shape index: {}]
  %s9 = inlined_call_operand.vmem [shape: f32[24,48], index: 9, kind: input, shape index: {}]
  %s10 = inlined_call_operand.hbm [shape: f32[1,48], index: 10, kind: input, shape index: {}]
  %s11 = inlined_call_operand.hbm [shape: f32[2,16,16,48], index: 11, kind: output, shape index: {}]
  %s12 = sld [smem:[#allocation0]]
  $region97: #{_lambda_.1} parent=0
    _
  %s14 = ssub.s32 1, %s12
  %s15 = scalar_select 0, %s14, %s12
  $region1: #{_lambda_.1} parent=0
    #allocation3 [shape = 'u8[512]{0}', space=vmem, size = 0x400, scoped, tag = 'input window, operand 4, single buffered']
    #allocation4 [shape = 's32[2]{0}', space=sflag, size = 0x8, scoped, tag = 'scoped memory for _lambda_.1']
    #allocation5 [shape = 's32[2]{0}', space=sflag, size = 0x8, scoped, tag = 'scoped memory for _lambda_.1']
    #allocation6 [shape = 'u8[6144]{0}', space=vmem, size = 0x1800, scoped, tag = 'input window, operand 5, single buffered']
    #allocation7 [shape = 's32[1]{0}', space=sflag, size = 0x4, scoped, tag = 'scoped memory for _lambda_.1']
    #allocation8 [shape = 'u8[512]{0}', space=vmem, size = 0x400, scoped, tag = 'input window, operand 6, single buffered']
    #allocation9 [shape = 'u8[512]{0}', space=vmem, size = 0x400, scoped, tag = 'input window, operand 8, single buffered']
    #allocation10 [shape = 's32[1]{0}', space=sflag, size = 0x4, scoped, tag = 'scoped memory for _lambda_.1']
    #allocation11 [shape = 'u8[512]{0}', space=vmem, size = 0x400, scoped, tag = 'input window, operand 10, single buffered']
    #allocation12 [shape = 'u8[131072]{0}', space=vmem, size = 0x20000, scoped, tag = 'output window, operand 0']
    %16 = vsyncpa [#allocation4], 0
    %17 = vsyncpa [#allocation7], 0
    %18 = vsyncpa [#allocation10], 0
    %19 = vsyncpa [#allocation5], 0
    %s20 = scalar_lea.sflag [#allocation5], 1
    %21 = vsyncpa %s20, 0
    loop: start=0, step=1, limit=6
    $region2: #{_lambda_.1} parent=1 // loop_pre_header
      _
    $region3: #{_lambda_.1} parent=1 // loop_header
      %s23 = sphi 0, %s27
      %p24 = scmp.ge.s32.totalorder %s23, 6
      %s30 = sphi 0, %s42
      %s31 = sphi 0, %s38
      %s32 = sphi 0, %s30
      %s33 = sphi 0, %s31
      %s34 = sphi 0, %s32
      %s35 = sphi 0, %s33
      %s55 = sphi 0, %s57
      %s58 = sphi 0, %s55
      %s59 = sphi 0, %s58
      %s75 = sphi 0, %s59
      %s83 = sphi 0, %s85
      %s86 = sphi 0, %s83
      %s87 = sphi 0, %s86
      %s103 = sphi 0, %s87
      %s119 = sphi 0, %s121
      %s122 = sphi 0, %s119
      %s123 = sphi 0, %s122
      %s139 = sphi 0, %s123
      %s143 = sphi 0, %s143
      %s145 = sphi 0, %s143
      %s146 = sphi 0, %s145
      %s160 = sphi 0, %s146
      %s164 = sphi 0, %s164
      %s166 = sphi 0, %s164
      %s167 = sphi 0, %s166
      %s181 = sphi 0, %s167
      %s185 = sphi 0, %s185
      %s187 = sphi 0, %s185
      %s188 = sphi 0, %s187
      %s202 = sphi 0, %s188
      %s206 = sphi 0, %s206
      %s208 = sphi 0, %s206
      %s209 = sphi 0, %s208
      %s223 = sphi 0, %s209
      %s227 = sphi 0, %s227
      %s229 = sphi 0, %s227
      %s230 = sphi 0, %s229
      %s244 = sphi 0, %s230
      %s248 = sphi 0, %s248
      %s250 = sphi 0, %s248
      %s251 = sphi 0, %s250
      %s265 = sphi 0, %s251
      %s269 = sphi 0, %s269
      %s271 = sphi 0, %s269
      %s272 = sphi 0, %s271
      %s286 = sphi 0, %s272
      %s290 = sphi 0, %s290
      %s292 = sphi 0, %s290
      %s293 = sphi 0, %s292
      %s307 = sphi 0, %s293
      %s315 = sphi 0, %s317
      %s318 = sphi 0, %s315
      %s319 = sphi 0, %s318
      %s335 = sphi 0, %s319
    $region4: #{_lambda_.1} parent=1 // loop_header_branch
      %26 = sbr.rel (%p24) target = $region8
    $region5: #{_lambda_.1} parent=1 // loop_body
      %s28 = ssub.s32 %s23, 1
      %s29 = ssub.s32 %s23, 2
      %s36 = sadd.s32 1, %s31
      %p37 = scmp.ge.s32.totalorder %s36, 2
      %s38 = scalar_select %p37, 0, %s36
      %s39 = sadd.s32 1, %s30
      %s40 = scalar_select %p37, %s39, %s30
      %p41 = scmp.ge.s32.totalorder %s40, 2
      %s42 = scalar_select %p41, 0, %s40
      %s43 = smul.u32 %s31, 8
      %s44 = ssub.s32 %s43, 1
      %p45 = scmp.gt.s32.totalorder %s44, 0
      %s46 = scalar_select %p45, %s44, 0
      %s47 = smul.u32 %s38, 8
      %s48 = ssub.s32 %s47, 1
      %p49 = scmp.gt.s32.totalorder %s48, 0
      %s50 = scalar_select %p49, %s48, 0
      %s51 = ssub.s32 %s30, %s42
      %s52 = ssub.s32 %s46, %s50
      %s53 = sor.u32 %s51, %s52
      %p54 = scmp.eq.s32.totalorder %s53, 0
      %s56 = sadd.s32 %s55, 1
      %s57 = scalar_select %p54, %s55, %s56
      %p60 = pneg %p54
      %p61 = scmp.eq.s32.totalorder %s23, 3
      %p62 = por %p60, %p61
      %p63 = scmp.ne.s32.totalorder %s55, %s58
      %p64 = scmp.eq.s32.totalorder %s23, 0
      %p65 = por %p63, %p64
      %p66 = scmp.ne.s32.totalorder %s55, %s58
      %p67 = scmp.eq.s32.totalorder %s28, 3
      %p68 = por %p66, %p67
      %p69 = scmp.ne.s32.totalorder %s58, %s59
      %p70 = scmp.eq.s32.totalorder %s28, 0
      %p71 = por %p69, %p70
      %p72 = scmp.ne.s32.totalorder %s58, %s59
      %p73 = scmp.eq.s32.totalorder %s29, 3
      %p74 = por %p72, %p73
      %p76 = scmp.ne.s32.totalorder %s59, %s75
      %p77 = scmp.eq.s32.totalorder %s29, 0
      %p78 = por %p76, %p77
      %s79 = ssub.s32 %s30, %s42
      %s80 = ssub.s32 %s31, %s38
      %s81 = sor.u32 %s79, %s80
      %p82 = scmp.eq.s32.totalorder %s81, 0
      %s84 = sadd.s32 %s83, 1
      %s85 = scalar_select %p82, %s83, %s84
      %p88 = pneg %p82
      %p89 = scmp.eq.s32.totalorder %s23, 3
      %p90 = por %p88, %p89
      %p91 = scmp.ne.s32.totalorder %s83, %s86
      %p92 = scmp.eq.s32.totalorder %s23, 0
      %p93 = por %p91, %p92
      %p94 = scmp.ne.s32.totalorder %s83, %s86
      %p95 = scmp.eq.s32.totalorder %s28, 3
      %p96 = por %p94, %p95
      %p97 = scmp.ne.s32.totalorder %s86, %s87
      %p98 = scmp.eq.s32.totalorder %s28, 0
      %p99 = por %p97, %p98
      %p100 = scmp.ne.s32.totalorder %s86, %s87
      %p101 = scmp.eq.s32.totalorder %s29, 3
      %p102 = por %p100, %p101
      %p104 = scmp.ne.s32.totalorder %s87, %s103
      %p105 = scmp.eq.s32.totalorder %s29, 0
      %p106 = por %p104, %p105
      %s107 = smul.u32 %s31, 8
      %s108 = sadd.s32 %s107, 8
      %p109 = scmp.lt.s32.totalorder %s108, 15
      %s110 = scalar_select %p109, %s108, 15
      %s111 = smul.u32 %s38, 8
      %s112 = sadd.s32 %s111, 8
      %p113 = scmp.lt.s32.totalorder %s112, 15
      %s114 = scalar_select %p113, %s112, 15
      %s115 = ssub.s32 %s30, %s42
      %s116 = ssub.s32 %s110, %s114
      %s117 = sor.u32 %s115, %s116
      %p118 = scmp.eq.s32.totalorder %s117, 0
      %s120 = sadd.s32 %s119, 1
      %s121 = scalar_select %p118, %s119, %s120
      %p124 = pneg %p118
      %p125 = scmp.eq.s32.totalorder %s23, 3
      %p126 = por %p124, %p125
      %p127 = scmp.ne.s32.totalorder %s119, %s122
      %p128 = scmp.eq.s32.totalorder %s23, 0
      %p129 = por %p127, %p128
      %p130 = scmp.ne.s32.totalorder %s119, %s122
      %p131 = scmp.eq.s32.totalorder %s28, 3
      %p132 = por %p130, %p131
      %p133 = scmp.ne.s32.totalorder %s122, %s123
      %p134 = scmp.eq.s32.totalorder %s28, 0
      %p135 = por %p133, %p134
      %p136 = scmp.ne.s32.totalorder %s122, %s123
      %p137 = scmp.eq.s32.totalorder %s29, 3
      %p138 = por %p136, %p137
      %p140 = scmp.ne.s32.totalorder %s123, %s139
      %p141 = scmp.eq.s32.totalorder %s29, 0
      %p142 = por %p140, %p141
      %s144 = sadd.s32 %s143, 1
      %p147 = scmp.eq.s32.totalorder %s23, 3
      %p148 = scmp.ne.s32.totalorder %s143, %s145
      %p149 = scmp.eq.s32.totalorder %s23, 0
      %p150 = por %p148, %p149
      %p151 = scmp.ne.s32.totalorder %s143, %s145
      %p152 = scmp.eq.s32.totalorder %s28, 3
      %p153 = por %p151, %p152
      %p154 = scmp.ne.s32.totalorder %s145, %s146
      %p155 = scmp.eq.s32.totalorder %s28, 0
      %p156 = por %p154, %p155
      %p157 = scmp.ne.s32.totalorder %s145, %s146
      %p158 = scmp.eq.s32.totalorder %s29, 3
      %p159 = por %p157, %p158
      %p161 = scmp.ne.s32.totalorder %s146, %s160
      %p162 = scmp.eq.s32.totalorder %s29, 0
      %p163 = por %p161, %p162
      %s165 = sadd.s32 %s164, 1
      %p168 = scmp.eq.s32.totalorder %s23, 3
      %p169 = scmp.ne.s32.totalorder %s164, %s166
      %p170 = scmp.eq.s32.totalorder %s23, 0
      %p171 = por %p169, %p170
      %p172 = scmp.ne.s32.totalorder %s164, %s166
      %p173 = scmp.eq.s32.totalorder %s28, 3
      %p174 = por %p172, %p173
      %p175 = scmp.ne.s32.totalorder %s166, %s167
      %p176 = scmp.eq.s32.totalorder %s28, 0
      %p177 = por %p175, %p176
      %p178 = scmp.ne.s32.totalorder %s166, %s167
      %p179 = scmp.eq.s32.totalorder %s29, 3
      %p180 = por %p178, %p179
      %p182 = scmp.ne.s32.totalorder %s167, %s181
      %p183 = scmp.eq.s32.totalorder %s29, 0
      %p184 = por %p182, %p183
      %s186 = sadd.s32 %s185, 1
      %p189 = scmp.eq.s32.totalorder %s23, 3
      %p190 = scmp.ne.s32.totalorder %s185, %s187
      %p191 = scmp.eq.s32.totalorder %s23, 0
      %p192 = por %p190, %p191
      %p193 = scmp.ne.s32.totalorder %s185, %s187
      %p194 = scmp.eq.s32.totalorder %s28, 3
      %p195 = por %p193, %p194
      %p196 = scmp.ne.s32.totalorder %s187, %s188
      %p197 = scmp.eq.s32.totalorder %s28, 0
      %p198 = por %p196, %p197
      %p199 = scmp.ne.s32.totalorder %s187, %s188
      %p200 = scmp.eq.s32.totalorder %s29, 3
      %p201 = por %p199, %p200
      %p203 = scmp.ne.s32.totalorder %s188, %s202
      %p204 = scmp.eq.s32.totalorder %s29, 0
      %p205 = por %p203, %p204
      %s207 = sadd.s32 %s206, 1
      %p210 = scmp.eq.s32.totalorder %s23, 3
      %p211 = scmp.ne.s32.totalorder %s206, %s208
      %p212 = scmp.eq.s32.totalorder %s23, 0
      %p213 = por %p211, %p212
      %p214 = scmp.ne.s32.totalorder %s206, %s208
      %p215 = scmp.eq.s32.totalorder %s28, 3
      %p216 = por %p214, %p215
      %p217 = scmp.ne.s32.totalorder %s208, %s209
      %p218 = scmp.eq.s32.totalorder %s28, 0
      %p219 = por %p217, %p218
      %p220 = scmp.ne.s32.totalorder %s208, %s209
      %p221 = scmp.eq.s32.totalorder %s29, 3
      %p222 = por %p220, %p221
      %p224 = scmp.ne.s32.totalorder %s209, %s223
      %p225 = scmp.eq.s32.totalorder %s29, 0
      %p226 = por %p224, %p225
      %s228 = sadd.s32 %s227, 1
      %p231 = scmp.eq.s32.totalorder %s23, 3
      %p232 = scmp.ne.s32.totalorder %s227, %s229
      %p233 = scmp.eq.s32.totalorder %s23, 0
      %p234 = por %p232, %p233
      %p235 = scmp.ne.s32.totalorder %s227, %s229
      %p236 = scmp.eq.s32.totalorder %s28, 3
      %p237 = por %p235, %p236
      %p238 = scmp.ne.s32.totalorder %s229, %s230
      %p239 = scmp.eq.s32.totalorder %s28, 0
      %p240 = por %p238, %p239
      %p241 = scmp.ne.s32.totalorder %s229, %s230
      %p242 = scmp.eq.s32.totalorder %s29, 3
      %p243 = por %p241, %p242
      %p245 = scmp.ne.s32.totalorder %s230, %s244
      %p246 = scmp.eq.s32.totalorder %s29, 0
      %p247 = por %p245, %p246
      %s249 = sadd.s32 %s248, 1
      %p252 = scmp.eq.s32.totalorder %s23, 3
      %p253 = scmp.ne.s32.totalorder %s248, %s250
      %p254 = scmp.eq.s32.totalorder %s23, 0
      %p255 = por %p253, %p254
      %p256 = scmp.ne.s32.totalorder %s248, %s250
      %p257 = scmp.eq.s32.totalorder %s28, 3
      %p258 = por %p256, %p257
      %p259 = scmp.ne.s32.totalorder %s250, %s251
      %p260 = scmp.eq.s32.totalorder %s28, 0
      %p261 = por %p259, %p260
      %p262 = scmp.ne.s32.totalorder %s250, %s251
      %p263 = scmp.eq.s32.totalorder %s29, 3
      %p264 = por %p262, %p263
      %p266 = scmp.ne.s32.totalorder %s251, %s265
      %p267 = scmp.eq.s32.totalorder %s29, 0
      %p268 = por %p266, %p267
      %s270 = sadd.s32 %s269, 1
      %p273 = scmp.eq.s32.totalorder %s23, 3
      %p274 = scmp.ne.s32.totalorder %s269, %s271
      %p275 = scmp.eq.s32.totalorder %s23, 0
      %p276 = por %p274, %p275
      %p277 = scmp.ne.s32.totalorder %s269, %s271
      %p278 = scmp.eq.s32.totalorder %s28, 3
      %p279 = por %p277, %p278
      %p280 = scmp.ne.s32.totalorder %s271, %s272
      %p281 = scmp.eq.s32.totalorder %s28, 0
      %p282 = por %p280, %p281
      %p283 = scmp.ne.s32.totalorder %s271, %s272
      %p284 = scmp.eq.s32.totalorder %s29, 3
      %p285 = por %p283, %p284
      %p287 = scmp.ne.s32.totalorder %s272, %s286
      %p288 = scmp.eq.s32.totalorder %s29, 0
      %p289 = por %p287, %p288
      %s291 = sadd.s32 %s290, 1
      %p294 = scmp.eq.s32.totalorder %s23, 3
      %p295 = scmp.ne.s32.totalorder %s290, %s292
      %p296 = scmp.eq.s32.totalorder %s23, 0
      %p297 = por %p295, %p296
      %p298 = scmp.ne.s32.totalorder %s290, %s292
      %p299 = scmp.eq.s32.totalorder %s28, 3
      %p300 = por %p298, %p299
      %p301 = scmp.ne.s32.totalorder %s292, %s293
      %p302 = scmp.eq.s32.totalorder %s28, 0
      %p303 = por %p301, %p302
      %p304 = scmp.ne.s32.totalorder %s292, %s293
      %p305 = scmp.eq.s32.totalorder %s29, 3
      %p306 = por %p304, %p305
      %p308 = scmp.ne.s32.totalorder %s293, %s307
      %p309 = scmp.eq.s32.totalorder %s29, 0
      %p310 = por %p308, %p309
      %s311 = ssub.s32 %s30, %s42
      %s312 = ssub.s32 %s31, %s38
      %s313 = sor.u32 %s311, %s312
      %p314 = scmp.eq.s32.totalorder %s313, 0
      %s316 = sadd.s32 %s315, 1
      %s317 = scalar_select %p314, %s315, %s316
      %p320 = pneg %p314
      %p321 = scmp.eq.s32.totalorder %s23, 3
      %p322 = por %p320, %p321
      %p323 = scmp.ne.s32.totalorder %s315, %s318
      %p324 = scmp.eq.s32.totalorder %s23, 0
      %p325 = por %p323, %p324
      %p326 = scmp.ne.s32.totalorder %s315, %s318
      %p327 = scmp.eq.s32.totalorder %s28, 3
      %p328 = por %p326, %p327
      %p329 = scmp.ne.s32.totalorder %s318, %s319
      %p330 = scmp.eq.s32.totalorder %s28, 0
      %p331 = por %p329, %p330
      %p332 = scmp.ne.s32.totalorder %s318, %s319
      %p333 = scmp.eq.s32.totalorder %s29, 3
      %p334 = por %p332, %p333
      %p336 = scmp.ne.s32.totalorder %s319, %s335
      %p337 = scmp.eq.s32.totalorder %s29, 0
      %p338 = por %p336, %p337
      %p339 = scmp.le.s32.totalorder 1, %s23
      %p340 = scmp.lt.s32.totalorder %s23, 5
      %p341 = pnand %p339, %p340
      %p342 = pneg %p341
      // Predicated region
      $region9: #{_lambda_.1} parent=5 // pred_check
        _
      $region10: #{_lambda_.1} parent=5 // pred_check_branch
        %344 = sbr.rel (%p341) target = $region12
      $region11: #{_lambda_.1} parent=5 // pred_region
        %s345 = ssub.s32 %s23, 1
        // Predicated region
        $region13: #{_lambda_.1} parent=11 // pred_check
          %p346 = pneg %p156
        $region14: #{_lambda_.1} parent=11 // pred_check_branch
          %348 = sbr.rel (%p346) target = $region16
        $region15: #{_lambda_.1} parent=11 // pred_region
          _
        $region16: #{_lambda_.1} parent=11 // pred_fallthru
          _
        // Predicated region
        $region17: #{_lambda_.1} parent=11 // pred_check
          %p349 = pneg %p177
        $region18: #{_lambda_.1} parent=11 // pred_check_branch
          %351 = sbr.rel (%p349) target = $region20
        $region19: #{_lambda_.1} parent=11 // pred_region
          %s353 = ssub.s32 16, 16
          %354 = vsyncadd [#allocation4], %s353
          %s356 = sshll.u32 [#allocation3], 4
          %s357 = int_to_ptr.vmem [resolvable:$true] %s356
          %359 = dma.hbm_to_vmem [thread:$0]  %s4, 16, %s357, [#allocation4]
        $region20: #{_lambda_.1} parent=11 // pred_fallthru
          _
        // Predicated region
        $region21: #{_lambda_.1} parent=11 // pred_check
          %p360 = pneg %p198
        $region22: #{_lambda_.1} parent=11 // pred_check_branch
          %362 = sbr.rel (%p360) target = $region24
        $region23: #{_lambda_.1} parent=11 // pred_region
          %s364 = ssub.s32 192, 192
          %365 = vsyncadd [#allocation7], %s364
          %s366 = sshll.u32 [#allocation6], 4
          %s367 = int_to_ptr.vmem [resolvable:$true] %s366
          %372 = dma.hbm_to_vmem [thread:$0]  %s5, 192, %s367, [#allocation7], 64, 64, 4
        $region24: #{_lambda_.1} parent=11 // pred_fallthru
          _
        // Predicated region
        $region25: #{_lambda_.1} parent=11 // pred_check
          %p373 = pneg %p219
        $region26: #{_lambda_.1} parent=11 // pred_check_branch
          %375 = sbr.rel (%p373) target = $region28
        $region27: #{_lambda_.1} parent=11 // pred_region
          %s377 = ssub.s32 16, 16
          %378 = vsyncadd [#allocation7], %s377
          %s380 = sshll.u32 [#allocation8], 4
          %s381 = int_to_ptr.vmem [resolvable:$true] %s380
          %383 = dma.hbm_to_vmem [thread:$0]  %s6, 16, %s381, [#allocation7]
        $region28: #{_lambda_.1} parent=11 // pred_fallthru
          _
        // Predicated region
        $region29: #{_lambda_.1} parent=11 // pred_check
          %p384 = pneg %p240
        $region30: #{_lambda_.1} parent=11 // pred_check_branch
          %386 = sbr.rel (%p384) target = $region32
        $region31: #{_lambda_.1} parent=11 // pred_region
          _
        $region32: #{_lambda_.1} parent=11 // pred_fallthru
          _
        // Predicated region
        $region33: #{_lambda_.1} parent=11 // pred_check
          %p387 = pneg %p261
        $region34: #{_lambda_.1} parent=11 // pred_check_branch
          %389 = sbr.rel (%p387) target = $region36
        $region35: #{_lambda_.1} parent=11 // pred_region
          %s391 = ssub.s32 16, 16
          %392 = vsyncadd [#allocation10], %s391
          %s394 = sshll.u32 [#allocation9], 4
          %s395 = int_to_ptr.vmem [resolvable:$true] %s394
          %397 = dma.hbm_to_vmem [thread:$0]  %s8, 16, %s395, [#allocation10]
        $region36: #{_lambda_.1} parent=11 // pred_fallthru
          _
        // Predicated region
        $region37: #{_lambda_.1} parent=11 // pred_check
          %p398 = pneg %p282
        $region38: #{_lambda_.1} parent=11 // pred_check_branch
          %400 = sbr.rel (%p398) target = $region40
        $region39: #{_lambda_.1} parent=11 // pred_region
          _
        $region40: #{_lambda_.1} parent=11 // pred_fallthru
          _
        // Predicated region
        $region41: #{_lambda_.1} parent=11 // pred_check
          %p401 = pneg %p303
        $region42: #{_lambda_.1} parent=11 // pred_check_branch
          %403 = sbr.rel (%p401) target = $region44
        $region43: #{_lambda_.1} parent=11 // pred_region
          %s405 = ssub.s32 16, 16
          %406 = vsyncadd [#allocation10], %s405
          %s408 = sshll.u32 [#allocation11], 4
          %s409 = int_to_ptr.vmem [resolvable:$true] %s408
          %411 = dma.hbm_to_vmem [thread:$0]  %s10, 16, %s409, [#allocation10]
        $region44: #{_lambda_.1} parent=11 // pred_fallthru
          _
      $region12: #{_lambda_.1} parent=5 // pred_fallthru
        _
      %p412 = scmp.lt.s32.totalorder %s23, 4
      // Predicated region
      $region45: #{_lambda_.1} parent=5 // pred_check
        %p413 = pneg %p412
      $region46: #{_lambda_.1} parent=5 // pred_check_branch
        %415 = sbr.rel (%p413) target = $region48
      $region47: #{_lambda_.1} parent=5 // pred_region
        // Predicated region
        $region49: #{_lambda_.1} parent=47 // pred_check
          %p416 = pneg %p65
        $region50: #{_lambda_.1} parent=47 // pred_check_branch
          %418 = sbr.rel (%p416) target = $region52
        $region51: #{_lambda_.1} parent=47 // pred_region
          %s419 = smul.u32 %s31, 8
          %s420 = ssub.s32 %s419, 1
          %p421 = scmp.gt.s32.totalorder %s420, 0
          %s422 = scalar_select %p421, %s420, 0
          %p423 = scmp.lt.s32.totalorder %s30, 1
          %s424 = scalar_select %p423, %s30, 1
          %p425 = scmp.lt.s32.totalorder %s422, 15
          %s426 = scalar_select %p425, %s422, 15
          %s427 = smul.addr %s426, 2
          %s428 = smul.addr %s424, 32
          %s429 = sadd.s32 %s427, %s428
          %s430 = smul.addr %s429, 8
          %s431 = scalar_lea.vmem %s0, %s430
          %s432 = smul.u32 %s31, 8
          %s433 = ssub.s32 %s432, 1
          %p434 = scmp.gt.s32.totalorder %s433, 0
          %s435 = scalar_select %p434, %s433, 0
        $region52: #{_lambda_.1} parent=47 // pred_fallthru
          _
        // Predicated region
        $region53: #{_lambda_.1} parent=47 // pred_check
          %p436 = pneg %p93
        $region54: #{_lambda_.1} parent=47 // pred_check_branch
          %438 = sbr.rel (%p436) target = $region56
        $region55: #{_lambda_.1} parent=47 // pred_region
          %s439 = smul.u32 8, %s31
          %p440 = scmp.lt.s32.totalorder %s30, 1
          %s441 = scalar_select %p440, %s30, 1
          %p442 = scmp.lt.s32.totalorder %s439, 15
          %s443 = scalar_select %p442, %s439, 15
          %s444 = smul.addr %s443, 2
          %s445 = smul.addr %s441, 32
          %s446 = sadd.s32 %s444, %s445
          %s447 = smul.addr %s446, 8
          %s448 = scalar_lea.vmem %s1, %s447
          %s449 = smul.u32 8, %s31
        $region56: #{_lambda_.1} parent=47 // pred_fallthru
          _
        // Predicated region
        $region57: #{_lambda_.1} parent=47 // pred_check
          %p450 = pneg %p129
        $region58: #{_lambda_.1} parent=47 // pred_check_branch
          %452 = sbr.rel (%p450) target = $region60
        $region59: #{_lambda_.1} parent=47 // pred_region
          %s453 = smul.u32 %s31, 8
          %s454 = sadd.s32 %s453, 8
          %p455 = scmp.lt.s32.totalorder %s454, 15
          %s456 = scalar_select %p455, %s454, 15
          %p457 = scmp.lt.s32.totalorder %s30, 1
          %s458 = scalar_select %p457, %s30, 1
          %p459 = scmp.lt.s32.totalorder %s456, 15
          %s460 = scalar_select %p459, %s456, 15
          %s461 = smul.addr %s460, 2
          %s462 = smul.addr %s458, 32
          %s463 = sadd.s32 %s461, %s462
          %s464 = smul.addr %s463, 8
          %s465 = scalar_lea.vmem %s2, %s464
          %s466 = smul.u32 %s31, 8
          %s467 = sadd.s32 %s466, 8
          %p468 = scmp.lt.s32.totalorder %s467, 15
          %s469 = scalar_select %p468, %s467, 15
        $region60: #{_lambda_.1} parent=47 // pred_fallthru
          _
      $region48: #{_lambda_.1} parent=5 // pred_fallthru
        _
      %p470 = scmp.le.s32.totalorder 1, %s23
      %p471 = scmp.lt.s32.totalorder %s23, 5
      %p472 = pnand %p470, %p471
      %p473 = pneg %p472
      // Predicated region
      $region61: #{_lambda_.1} parent=5 // pred_check
        _
      $region62: #{_lambda_.1} parent=5 // pred_check_branch
        %475 = sbr.rel (%p472) target = $region64
      $region63: #{_lambda_.1} parent=5 // pred_region
        %s476 = ssub.s32 %s23, 1
        // Predicated region
        $region65: #{_lambda_.1} parent=63 // pred_check
          %p477 = pneg %p177
        $region66: #{_lambda_.1} parent=63 // pred_check_branch
          %479 = sbr.rel (%p477) target = $region68
        $region67: #{_lambda_.1} parent=63 // pred_region
          %480 = dma.done [#allocation4], 16
        $region68: #{_lambda_.1} parent=63 // pred_fallthru
          _
        // Predicated region
        $region69: #{_lambda_.1} parent=63 // pred_check
          %p481 = pneg %p198
        $region70: #{_lambda_.1} parent=63 // pred_check_branch
          %483 = sbr.rel (%p481) target = $region72
        $region71: #{_lambda_.1} parent=63 // pred_region
          %484 = dma.done [#allocation7], 192
        $region72: #{_lambda_.1} parent=63 // pred_fallthru
          _
        // Predicated region
        $region73: #{_lambda_.1} parent=63 // pred_check
          %p485 = pneg %p219
        $region74: #{_lambda_.1} parent=63 // pred_check_branch
          %487 = sbr.rel (%p485) target = $region76
        $region75: #{_lambda_.1} parent=63 // pred_region
          %488 = dma.done [#allocation7], 16
        $region76: #{_lambda_.1} parent=63 // pred_fallthru
          _
        // Predicated region
        $region77: #{_lambda_.1} parent=63 // pred_check
          %p489 = pneg %p261
        $region78: #{_lambda_.1} parent=63 // pred_check_branch
          %491 = sbr.rel (%p489) target = $region80
        $region79: #{_lambda_.1} parent=63 // pred_region
          %492 = dma.done [#allocation10], 16
        $region80: #{_lambda_.1} parent=63 // pred_fallthru
          _
        // Predicated region
        $region81: #{_lambda_.1} parent=63 // pred_check
          %p493 = pneg %p303
        $region82: #{_lambda_.1} parent=63 // pred_check_branch
          %495 = sbr.rel (%p493) target = $region84
        $region83: #{_lambda_.1} parent=63 // pred_region
          %496 = dma.done [#allocation10], 16
        $region84: #{_lambda_.1} parent=63 // pred_fallthru
          _
        %s497 = smul.u32 %s33, 8
        %s498 = ssub.s32 %s497, 1
        %p499 = scmp.gt.s32.totalorder %s498, 0
        %s500 = scalar_select %p499, %s498, 0
        %p501 = scmp.lt.s32.totalorder %s32, 1
        %s502 = scalar_select %p501, %s32, 1
        %p503 = scmp.lt.s32.totalorder %s500, 15
        %s504 = scalar_select %p503, %s500, 15
        %s505 = smul.addr %s504, 2
        %s506 = smul.addr %s502, 32
        %s507 = sadd.s32 %s505, %s506
        %s508 = smul.addr %s507, 8
        %s509 = scalar_lea.vmem %s0, %s508
        %p510 = pneg %p71
        %p511 = pneg %p68
        %s512 = smul.u32 8, %s33
        %p513 = scmp.lt.s32.totalorder %s32, 1
        %s514 = scalar_select %p513, %s32, 1
        %p515 = scmp.lt.s32.totalorder %s512, 15
        %s516 = scalar_select %p515, %s512, 15
        %s517 = smul.addr %s516, 2
        %s518 = smul.addr %s514, 32
        %s519 = sadd.s32 %s517, %s518
        %s520 = smul.addr %s519, 8
        %s521 = scalar_lea.vmem %s1, %s520
        %p522 = pneg %p99
        %p523 = pneg %p96
        %s524 = smul.u32 %s33, 8
        %s525 = sadd.s32 %s524, 8
        %p526 = scmp.lt.s32.totalorder %s525, 15
        %s527 = scalar_select %p526, %s525, 15
        %p528 = scmp.lt.s32.totalorder %s32, 1
        %s529 = scalar_select %p528, %s32, 1
        %p530 = scmp.lt.s32.totalorder %s527, 15
        %s531 = scalar_select %p530, %s527, 15
        %s532 = smul.addr %s531, 2
        %s533 = smul.addr %s529, 32
        %s534 = sadd.s32 %s532, %s533
        %s535 = smul.addr %s534, 8
        %s536 = scalar_lea.vmem %s2, %s535
        %p537 = pneg %p135
        %p538 = pneg %p132
        %p539 = pneg %p156
        %p540 = pneg %p153
        %p541 = pneg %p177
        %p542 = pneg %p174
        %p543 = pneg %p198
        %p544 = pneg %p195
        %p545 = pneg %p219
        %p546 = pneg %p216
        %p547 = pneg %p240
        %p548 = pneg %p237
        %p549 = pneg %p261
        %p550 = pneg %p258
        %p551 = pneg %p282
        %p552 = pneg %p279
        %p553 = pneg %p303
        %p554 = pneg %p300
        %p555 = pneg %p331
        %p556 = pneg %p328
        %s557 = sand.u32 %s318, 1
        %s558 = scalar_lea.sflag [#allocation5], %s557
        %s559 = sand.u32 %s318, 1
        %s560 = smul.addr %s559, 128
        %s561 = scalar_lea.vmem [#allocation12], %s560
        %s562 = smul.u32 %s33, 8
        %s563 = ssub.s32 %s562, 1
        %p564 = scmp.gt.s32.totalorder %s563, 0
        %s565 = scalar_select %p564, %s563, 0
        %p566 = scmp.lt.s32.totalorder %s32, 1
        %s567 = scalar_select %p566, %s32, 1
        %p568 = scmp.lt.s32.totalorder %s565, 15
        %s569 = scalar_select %p568, %s565, 15
        %s570 = smul.addr %s569, 2
        %s571 = smul.addr %s567, 32
        %s572 = sadd.s32 %s570, %s571
        %s573 = smul.addr %s572, 8
        %s574 = scalar_lea.vmem %s0, %s573
        %s575 = smul.u32 %s33, 8
        %s576 = ssub.s32 %s575, 1
        %p577 = scmp.gt.s32.totalorder %s576, 0
        %s578 = scalar_select %p577, %s576, 0
        %s579 = smul.u32 8, %s33
        %p580 = scmp.lt.s32.totalorder %s32, 1
        %s581 = scalar_select %p580, %s32, 1
        %p582 = scmp.lt.s32.totalorder %s579, 15
        %s583 = scalar_select %p582, %s579, 15
        %s584 = smul.addr %s583, 2
        %s585 = smul.addr %s581, 32
        %s586 = sadd.s32 %s584, %s585
        %s587 = smul.addr %s586, 8
        %s588 = scalar_lea.vmem %s1, %s587
        %s589 = smul.u32 8, %s33
        %s590 = smul.u32 %s33, 8
        %s591 = sadd.s32 %s590, 8
        %p592 = scmp.lt.s32.totalorder %s591, 15
        %s593 = scalar_select %p592, %s591, 15
        %p594 = scmp.lt.s32.totalorder %s32, 1
        %s595 = scalar_select %p594, %s32, 1
        %p596 = scmp.lt.s32.totalorder %s593, 15
        %s597 = scalar_select %p596, %s593, 15
        %s598 = smul.addr %s597, 2
        %s599 = smul.addr %s595, 32
        %s600 = sadd.s32 %s598, %s599
        %s601 = smul.addr %s600, 8
        %s602 = scalar_lea.vmem %s2, %s601
        %s603 = smul.u32 %s33, 8
        %s604 = sadd.s32 %s603, 8
        %p605 = scmp.lt.s32.totalorder %s604, 15
        %s606 = scalar_select %p605, %s604, 15
        %s607 = smul.u32 8, %s33
        %p608 = scmp.gt.s32.totalorder %s33, 0
        %s609 = scalar_select %p608, 1, 0
        %s610 = scvt.s32.f32 %s609
        %p611 = scmp.lt.s32.totalorder %s33, 1
        %s612 = scalar_select %p611, 1, 0
        %s613 = scvt.s32.f32 %s612
        %v614 = vld [vmem:[%s588] sm:$0xff]
        %v615 = vld [vmem:[%s588 + $0x8] sm:$0xff]
        %v616 = vld [vmem:[%s588 + $0x10] sm:$0xff]
        %v617 = vld [vmem:[%s588 + $0x18] sm:$0xff]
        %v618 = vld [vmem:[%s588 + $0x20] sm:$0xff]
        %v619 = vld [vmem:[%s588 + $0x28] sm:$0xff]
        %v620 = vld [vmem:[%s588 + $0x30] sm:$0xff]
        %v621 = vld [vmem:[%s588 + $0x38] sm:$0xff]
        %v622 = vld [vmem:[%s588 + $0x40] sm:$0xff]
        %v623 = vld [vmem:[%s588 + $0x48] sm:$0xff]
        %v624 = vld [vmem:[%s588 + $0x50] sm:$0xff]
        %v625 = vld [vmem:[%s588 + $0x58] sm:$0xff]
        %v626 = vld [vmem:[%s588 + $0x60] sm:$0xff]
        %v627 = vld [vmem:[%s588 + $0x68] sm:$0xff]
        %v628 = vld [vmem:[%s588 + $0x70] sm:$0xff]
        %v629 = vld [vmem:[%s588 + $0x78] sm:$0xff]
        %v630 = vld [vmem:[%s3] sm:$0xff]
        %v631 = vld [vmem:[%s3 + $0x8] sm:$0xff]
        %v632 = vld [vmem:[%s3 + $0x10] sm:$0xff]
        %v633 = vld [vmem:[#allocation3] sm:$0x1]
        %v635 = vlaneseq
        %v636 = vshrl.u32 %v635, 7
        %v637 = vsub.s32 0, %v636
        %v638 = vrot.slane %v633, %v637
        %vm640 = vcmask 195584
        %v642 = vsel %vm640, %v614, 0
        %v645 = vsel %vm640, %v615, 0
        %v648 = vsel %vm640, %v616, 0
        %v651 = vsel %vm640, %v617, 0
        %v654 = vsel %vm640, %v618, 0
        %v657 = vsel %vm640, %v619, 0
        %v660 = vsel %vm640, %v620, 0
        %v663 = vsel %vm640, %v621, 0
        %v666 = vsel %vm640, %v622, 0
        %v669 = vsel %vm640, %v623, 0
        %v672 = vsel %vm640, %v624, 0
        %v675 = vsel %vm640, %v625, 0
        %v678 = vsel %vm640, %v626, 0
        %v681 = vsel %vm640, %v627, 0
        %v684 = vsel %vm640, %v628, 0
        %v687 = vsel %vm640, %v629, 0
        %689 = vmatprep.subr.mxu0 0.0
        %690 = vmatpush1.msra.mxu0 0.0
        %691 = vmatprep.subr.mxu0 0.0
        %692 = vmatpush1.msra.mxu0 0.0
        %693 = vmatprep.subr.mxu0 0.0
        %694 = vmatpush1.msra.mxu0 0.0
        %695 = vmatprep.subr.mxu0 0.0
        %696 = vmatpush1.msra.mxu0 0.0
        %697 = vmatprep.subr.mxu0 0.0
        %698 = vmatpush1.msra.mxu0 0.0
        %699 = vmatprep.subr.mxu0 0.0
        %700 = vmatpush1.msra.mxu0 0.0
        %701 = vmatprep.subr.mxu0 0.0
        %702 = vmatpush1.msra.mxu0 0.0
        %703 = vmatprep.subr.mxu0 0.0
        %704 = vmatpush1.msra.mxu0 0.0
        %705 = vmatprep.subr.mxu0 0.0
        %706 = vmatpush1.msra.mxu0 0.0
        %707 = vmatprep.subr.mxu0 0.0
        %708 = vmatpush1.msra.mxu0 0.0
        %709 = vmatprep.subr.mxu0 0.0
        %710 = vmatpush1.msra.mxu0 0.0
        %711 = vmatprep.subr.mxu0 0.0
        %712 = vmatpush1.msra.mxu0 0.0
        %713 = vmatprep.subr.mxu0 0.0
        %714 = vmatpush1.msra.mxu0 0.0
        %715 = vmatprep.subr.mxu0 0.0
        %716 = vmatpush1.msra.mxu0 %v632
        %717 = vmatprep.subr.mxu0 0.0
        %718 = vmatpush1.msra.mxu0 %v631
        %719 = vmatprep.subr.mxu0 0.0
        %720 = vmatpush1.msra.mxu0 %v630
        %721 = vmatprep.subr.mxu0 0.0
        %722 = vmatpush2.msra.mxu0 0.0
        %723 = vmatprep.subr.mxu0 0.0
        %724 = vmatpush2.msra.mxu0 0.0
        %725 = vmatprep.subr.mxu0 0.0
        %726 = vmatpush2.msra.mxu0 0.0
        %727 = vmatprep.subr.mxu0 0.0
        %728 = vmatpush2.msra.mxu0 0.0
        %729 = vmatprep.subr.mxu0 0.0
        %730 = vmatpush2.msra.mxu0 0.0
        %731 = vmatprep.subr.mxu0 0.0
        %732 = vmatpush2.msra.mxu0 0.0
        %733 = vmatprep.subr.mxu0 0.0
        %734 = vmatpush2.msra.mxu0 0.0
        %735 = vmatprep.subr.mxu0 0.0
        %736 = vmatpush2.msra.mxu0 0.0
        %737 = vmatprep.subr.mxu0 0.0
        %738 = vmatpush2.msra.mxu0 0.0
        %739 = vmatprep.subr.mxu0 0.0
        %740 = vmatpush2.msra.mxu0 0.0
        %741 = vmatprep.subr.mxu0 0.0
        %742 = vmatpush2.msra.mxu0 0.0
        %743 = vmatprep.subr.mxu0 0.0
        %744 = vmatpush2.msra.mxu0 0.0
        %745 = vmatprep.subr.mxu0 0.0
        %746 = vmatpush2.msra.mxu0 0.0
        %747 = vmatprep.subr.mxu0 0.0
        %748 = vmatpush2.msra.mxu0 0.0
        %749 = vmatprep.subr.mxu0 0.0
        %750 = vmatpush2.msra.mxu0 0.0
        %751 = vmatprep.subr.mxu0 0.0
        %752 = vmatpush2.msra.mxu0 0.0
        %753 = vmatprep.mubr.f32.mxu0 0.0
        %754 = vmatmul.mubr.f32.gmra.mxu0 %v642
        %v755 = vpop.f32.mrf.mxu0
        %v756 = vadd.f32 %v638, %v755
        %v757 = vpop.f32.mrf.mxu0
        %758 = vmatprep.mubr.f32.mxu0 0.0
        %759 = vmatmul.mubr.f32.gmra.mxu0 %v645
        %v760 = vpop.f32.mrf.mxu0
        %v761 = vadd.f32 %v638, %v760
        %v762 = vpop.f32.mrf.mxu0
        %763 = vmatprep.mubr.f32.mxu0 0.0
        %764 = vmatmul.mubr.f32.gmra.mxu0 %v648
        %v765 = vpop.f32.mrf.mxu0
        %v766 = vadd.f32 %v638, %v765
        %v767 = vpop.f32.mrf.mxu0
        %768 = vmatprep.mubr.f32.mxu0 0.0
        %769 = vmatmul.mubr.f32.gmra.mxu0 %v651
        %v770 = vpop.f32.mrf.mxu0
        %v771 = vadd.f32 %v638, %v770
        %v772 = vpop.f32.mrf.mxu0
        %773 = vmatprep.mubr.f32.mxu0 0.0
        %774 = vmatmul.mubr.f32.gmra.mxu0 %v654
        %v775 = vpop.f32.mrf.mxu0
        %v776 = vadd.f32 %v638, %v775
        %v777 = vpop.f32.mrf.mxu0
        %778 = vmatprep.mubr.f32.mxu0 0.0
        %779 = vmatmul.mubr.f32.gmra.mxu0 %v657
        %v780 = vpop.f32.mrf.mxu0
        %v781 = vadd.f32 %v638, %v780
        %v782 = vpop.f32.mrf.mxu0
        %783 = vmatprep.mubr.f32.mxu0 0.0
        %784 = vmatmul.mubr.f32.gmra.mxu0 %v660
        %v785 = vpop.f32.mrf.mxu0
        %v786 = vadd.f32 %v638, %v785
        %v787 = vpop.f32.mrf.mxu0
        %788 = vmatprep.mubr.f32.mxu0 0.0
        %789 = vmatmul.mubr.f32.gmra.mxu0 %v663
        %v790 = vpop.f32.mrf.mxu0
        %v791 = vadd.f32 %v638, %v790
        %v792 = vpop.f32.mrf.mxu0
        %793 = vmatprep.mubr.f32.mxu0 0.0
        %794 = vmatmul.mubr.f32.gmra.mxu0 %v666
        %v795 = vpop.f32.mrf.mxu0
        %v796 = vadd.f32 %v638, %v795
        %v797 = vpop.f32.mrf.mxu0
        %798 = vmatprep.mubr.f32.mxu0 0.0
        %799 = vmatmul.mubr.f32.gmra.mxu0 %v669
        %v800 = vpop.f32.mrf.mxu0
        %v801 = vadd.f32 %v638, %v800
        %v802 = vpop.f32.mrf.mxu0
        %803 = vmatprep.mubr.f32.mxu0 0.0
        %804 = vmatmul.mubr.f32.gmra.mxu0 %v672
        %v805 = vpop.f32.mrf.mxu0
        %v806 = vadd.f32 %v638, %v805
        %v807 = vpop.f32.mrf.mxu0
        %808 = vmatprep.mubr.f32.mxu0 0.0
        %809 = vmatmul.mubr.f32.gmra.mxu0 %v675
        %v810 = vpop.f32.mrf.mxu0
        %v811 = vadd.f32 %v638, %v810
        %v812 = vpop.f32.mrf.mxu0
        %813 = vmatprep.mubr.f32.mxu0 0.0
        %814 = vmatmul.mubr.f32.gmra.mxu0 %v678
        %v815 = vpop.f32.mrf.mxu0
        %v816 = vadd.f32 %v638, %v815
        %v817 = vpop.f32.mrf.mxu0
        %818 = vmatprep.mubr.f32.mxu0 0.0
        %819 = vmatmul.mubr.f32.gmra.mxu0 %v681
        %v820 = vpop.f32.mrf.mxu0
        %v821 = vadd.f32 %v638, %v820
        %v822 = vpop.f32.mrf.mxu0
        %823 = vmatprep.mubr.f32.mxu0 0.0
        %824 = vmatmul.mubr.f32.gmra.mxu0 %v684
        %v825 = vpop.f32.mrf.mxu0
        %v826 = vadd.f32 %v638, %v825
        %v827 = vpop.f32.mrf.mxu0
        %828 = vmatprep.mubr.f32.mxu0 0.0
        %829 = vmatmul.mubr.f32.gmra.mxu0 %v687
        %v830 = vpop.f32.mrf.mxu0
        %v831 = vadd.f32 %v638, %v830
        %v832 = vpop.f32.mrf.mxu0
        %833 = vdwg.mxu0
        %v834 = vmax.f32 %v756, 0.0
        %v835 = vmax.f32 %v761, 0.0
        %v836 = vmax.f32 %v766, 0.0
        %v837 = vmax.f32 %v771, 0.0
        %v838 = vmax.f32 %v776, 0.0
        %v839 = vmax.f32 %v781, 0.0
        %v840 = vmax.f32 %v786, 0.0
        %v841 = vmax.f32 %v791, 0.0
        %v842 = vmax.f32 %v796, 0.0
        %v843 = vmax.f32 %v801, 0.0
        %v844 = vmax.f32 %v806, 0.0
        %v845 = vmax.f32 %v811, 0.0
        %v846 = vmax.f32 %v816, 0.0
        %v847 = vmax.f32 %v821, 0.0
        %v848 = vmax.f32 %v826, 0.0
        %v849 = vmax.f32 %v831, 0.0
        %vm850 = vcmask 97280
        %851 = vst.msk [vmem:[#allocation2] sm:$0xff] %vm850, 0.0
        %852 = vst.msk [vmem:[#allocation2 + $0x8] sm:$0xff] %vm850, 0.0
        %vm853 = vcmask 91136
        %854 = vst.msk [vmem:[#allocation2 + $0x10] sm:$0x3] %vm853, 0.0
        %855 = vst.msk [vmem:[#allocation2 + $0x18] sm:$0xff] %vm850, 0.0
        %856 = vst.msk [vmem:[#allocation2 + $0x20] sm:$0xff] %vm850, 0.0
        %857 = vst.msk [vmem:[#allocation2 + $0x28] sm:$0x3] %vm853, 0.0
        %858 = vst.msk [vmem:[#allocation2 + $0x30] sm:$0xff] %vm850, 0.0
        %859 = vst.msk [vmem:[#allocation2 + $0x38] sm:$0xff] %vm850, 0.0
        %860 = vst.msk [vmem:[#allocation2 + $0x40] sm:$0x3] %vm853, 0.0
        %861 = vst.msk [vmem:[#allocation2 + $0x48] sm:$0xff] %vm850, 0.0
        %862 = vst.msk [vmem:[#allocation2 + $0x50] sm:$0xff] %vm850, 0.0
        %863 = vst.msk [vmem:[#allocation2 + $0x58] sm:$0x3] %vm853, 0.0
        %864 = vst.msk [vmem:[#allocation2 + $0x60] sm:$0xff] %vm850, 0.0
        %865 = vst.msk [vmem:[#allocation2 + $0x68] sm:$0xff] %vm850, 0.0
        %866 = vst.msk [vmem:[#allocation2 + $0x70] sm:$0x3] %vm853, 0.0
        %867 = vst.msk [vmem:[#allocation2 + $0x78] sm:$0xff] %vm850, 0.0
        %868 = vst.msk [vmem:[#allocation2 + $0x80] sm:$0xff] %vm850, 0.0
        %869 = vst.msk [vmem:[#allocation2 + $0x88] sm:$0x3] %vm853, 0.0
        %870 = vst.msk [vmem:[#allocation2 + $0x90] sm:$0xff] %vm850, 0.0
        %871 = vst.msk [vmem:[#allocation2 + $0x98] sm:$0xff] %vm850, 0.0
        %872 = vst.msk [vmem:[#allocation2 + $0xa0] sm:$0x3] %vm853, 0.0
        %873 = vst.msk [vmem:[#allocation2 + $0xa8] sm:$0xff] %vm850, 0.0
        %874 = vst.msk [vmem:[#allocation2 + $0xb0] sm:$0xff] %vm850, 0.0
        %875 = vst.msk [vmem:[#allocation2 + $0xb8] sm:$0x3] %vm853, 0.0
        %876 = vst.msk [vmem:[#allocation2 + $0xc0] sm:$0xff] %vm850, 0.0
        %877 = vst.msk [vmem:[#allocation2 + $0xc8] sm:$0xff] %vm850, 0.0
        %878 = vst.msk [vmem:[#allocation2 + $0xd0] sm:$0x3] %vm853, 0.0
        %879 = vst.msk [vmem:[#allocation2 + $0xd8] sm:$0xff] %vm850, 0.0
        %880 = vst.msk [vmem:[#allocation2 + $0xe0] sm:$0xff] %vm850, 0.0
        %881 = vst.msk [vmem:[#allocation2 + $0xe8] sm:$0x3] %vm853, 0.0
        %s882 = scalar_lea.vmem [#allocation2], 24
        %883 = vst.msk [vmem:[%s882 + $0x1] sm:$0xff] %vm850, %v834
        %884 = vst.msk [vmem:[%s882 + $0x9] sm:$0xff] %vm850, %v835
        %885 = vst.msk [vmem:[%s882 + $0x19] sm:$0xff] %vm850, %v836
        %886 = vst.msk [vmem:[%s882 + $0x21] sm:$0xff] %vm850, %v837
        %887 = vst.msk [vmem:[%s882 + $0x31] sm:$0xff] %vm850, %v838
        %888 = vst.msk [vmem:[%s882 + $0x39] sm:$0xff] %vm850, %v839
        %889 = vst.msk [vmem:[%s882 + $0x49] sm:$0xff] %vm850, %v840
        %890 = vst.msk [vmem:[%s882 + $0x51] sm:$0xff] %vm850, %v841
        %891 = vst.msk [vmem:[%s882 + $0x61] sm:$0xff] %vm850, %v842
        %892 = vst.msk [vmem:[%s882 + $0x69] sm:$0xff] %vm850, %v843
        %893 = vst.msk [vmem:[%s882 + $0x79] sm:$0xff] %vm850, %v844
        %894 = vst.msk [vmem:[%s882 + $0x81] sm:$0xff] %vm850, %v845
        %895 = vst.msk [vmem:[%s882 + $0x91] sm:$0xff] %vm850, %v846
        %896 = vst.msk [vmem:[%s882 + $0x99] sm:$0xff] %vm850, %v847
        %897 = vst.msk [vmem:[%s882 + $0xa9] sm:$0xff] %vm850, %v848
        %898 = vst.msk [vmem:[%s882 + $0xb1] sm:$0xff] %vm850, %v849
        %v899 = vld [vmem:[%s574] sm:$0xff]
        %v900 = vld [vmem:[%s574 + $0x8] sm:$0xff]
        %v901 = vld [vmem:[%s3] sm:$0xff]
        %v902 = vld [vmem:[%s3 + $0x8] sm:$0xff]
        %v903 = vld [vmem:[%s3 + $0x10] sm:$0xff]
        %v904 = vld [vmem:[#allocation3] sm:$0x1]
        %v906 = vlaneseq
        %v907 = vshrl.u32 %v906, 7
        %v908 = vsub.s32 0, %v907
        %v909 = vrot.slane %v904, %v908
        %v912 = vsel %vm640, %v899, 0
        %v915 = vsel %vm640, %v900, 0
        %917 = vmatprep.subr.mxu0 0.0
        %918 = vmatpush1.msra.mxu0 0.0
        %919 = vmatprep.subr.mxu0 0.0
        %920 = vmatpush1.msra.mxu0 0.0
        %921 = vmatprep.subr.mxu0 0.0
        %922 = vmatpush1.msra.mxu0 0.0
        %923 = vmatprep.subr.mxu0 0.0
        %924 = vmatpush1.msra.mxu0 0.0
        %925 = vmatprep.subr.mxu0 0.0
        %926 = vmatpush1.msra.mxu0 0.0
        %927 = vmatprep.subr.mxu0 0.0
        %928 = vmatpush1.msra.mxu0 0.0
        %929 = vmatprep.subr.mxu0 0.0
        %930 = vmatpush1.msra.mxu0 0.0
        %931 = vmatprep.subr.mxu0 0.0
        %932 = vmatpush1.msra.mxu0 0.0
        %933 = vmatprep.subr.mxu0 0.0
        %934 = vmatpush1.msra.mxu0 0.0
        %935 = vmatprep.subr.mxu0 0.0
        %936 = vmatpush1.msra.mxu0 0.0
        %937 = vmatprep.subr.mxu0 0.0
        %938 = vmatpush1.msra.mxu0 0.0
        %939 = vmatprep.subr.mxu0 0.0
        %940 = vmatpush1.msra.mxu0 0.0
        %941 = vmatprep.subr.mxu0 0.0
        %942 = vmatpush1.msra.mxu0 0.0
        %943 = vmatprep.subr.mxu0 0.0
        %944 = vmatpush1.msra.mxu0 %v903
        %945 = vmatprep.subr.mxu0 0.0
        %946 = vmatpush1.msra.mxu0 %v902
        %947 = vmatprep.subr.mxu0 0.0
        %948 = vmatpush1.msra.mxu0 %v901
        %949 = vmatprep.subr.mxu0 0.0
        %950 = vmatpush2.msra.mxu0 0.0
        %951 = vmatprep.subr.mxu0 0.0
        %952 = vmatpush2.msra.mxu0 0.0
        %953 = vmatprep.subr.mxu0 0.0
        %954 = vmatpush2.msra.mxu0 0.0
        %955 = vmatprep.subr.mxu0 0.0
        %956 = vmatpush2.msra.mxu0 0.0
        %957 = vmatprep.subr.mxu0 0.0
        %958 = vmatpush2.msra.mxu0 0.0
        %959 = vmatprep.subr.mxu0 0.0
        %960 = vmatpush2.msra.mxu0 0.0
        %961 = vmatprep.subr.mxu0 0.0
        %962 = vmatpush2.msra.mxu0 0.0
        %963 = vmatprep.subr.mxu0 0.0
        %964 = vmatpush2.msra.mxu0 0.0
        %965 = vmatprep.subr.mxu0 0.0
        %966 = vmatpush2.msra.mxu0 0.0
        %967 = vmatprep.subr.mxu0 0.0
        %968 = vmatpush2.msra.mxu0 0.0
        %969 = vmatprep.subr.mxu0 0.0
        %970 = vmatpush2.msra.mxu0 0.0
        %971 = vmatprep.subr.mxu0 0.0
        %972 = vmatpush2.msra.mxu0 0.0
        %973 = vmatprep.subr.mxu0 0.0
        %974 = vmatpush2.msra.mxu0 0.0
        %975 = vmatprep.subr.mxu0 0.0
        %976 = vmatpush2.msra.mxu0 0.0
        %977 = vmatprep.subr.mxu0 0.0
        %978 = vmatpush2.msra.mxu0 0.0
        %979 = vmatprep.subr.mxu0 0.0
        %980 = vmatpush2.msra.mxu0 0.0
        %981 = vmatprep.mubr.f32.mxu0 0.0
        %982 = vmatmul.mubr.f32.gmra.mxu0 %v912
        %v983 = vpop.f32.mrf.mxu0
        %v984 = vadd.f32 %v909, %v983
        %v985 = vpop.f32.mrf.mxu0
        %986 = vmatprep.mubr.f32.mxu0 0.0
        %987 = vmatmul.mubr.f32.gmra.mxu0 %v915
        %v988 = vpop.f32.mrf.mxu0
        %v989 = vadd.f32 %v909, %v988
        %v990 = vpop.f32.mrf.mxu0
        %991 = vdwg.mxu0
        %v992 = vmax.f32 %v984, 0.0
        %v993 = vmax.f32 %v989, 0.0
        %v994 = vstv %s610
        %v995 = vmul.f32 %v992, %v994
        %v996 = vmul.f32 %v993, %v994
        %997 = vst.msk [vmem:[#allocation2 + $0x1] sm:$0xff] %vm850, %v995
        %998 = vst.msk [vmem:[#allocation2 + $0x9] sm:$0xff] %vm850, %v996
        %v999 = vld [vmem:[%s602] sm:$0xff]
        %v1000 = vld [vmem:[%s602 + $0x8] sm:$0xff]
        %v1001 = vld [vmem:[%s3] sm:$0xff]
        %v1002 = vld [vmem:[%s3 + $0x8] sm:$0xff]
        %v1003 = vld [vmem:[%s3 + $0x10] sm:$0xff]
        %v1004 = vld [vmem:[#allocation3] sm:$0x1]
        %v1006 = vlaneseq
        %v1007 = vshrl.u32 %v1006, 7
        %v1008 = vsub.s32 0, %v1007
        %v1009 = vrot.slane %v1004, %v1008
        %v1012 = vsel %vm640, %v999, 0
        %v1015 = vsel %vm640, %v1000, 0
        %1017 = vmatprep.subr.mxu0 0.0
        %1018 = vmatpush1.msra.mxu0 0.0
        %1019 = vmatprep.subr.mxu0 0.0
        %1020 = vmatpush1.msra.mxu0 0.0
        %1021 = vmatprep.subr.mxu0 0.0
        %1022 = vmatpush1.msra.mxu0 0.0
        %1023 = vmatprep.subr.mxu0 0.0
        %1024 = vmatpush1.msra.mxu0 0.0
        %1025 = vmatprep.subr.mxu0 0.0
        %1026 = vmatpush1.msra.mxu0 0.0
        %1027 = vmatprep.subr.mxu0 0.0
        %1028 = vmatpush1.msra.mxu0 0.0
        %1029 = vmatprep.subr.mxu0 0.0
        %1030 = vmatpush1.msra.mxu0 0.0
        %1031 = vmatprep.subr.mxu0 0.0
        %1032 = vmatpush1.msra.mxu0 0.0
        %1033 = vmatprep.subr.mxu0 0.0
        %1034 = vmatpush1.msra.mxu0 0.0
        %1035 = vmatprep.subr.mxu0 0.0
        %1036 = vmatpush1.msra.mxu0 0.0
        %1037 = vmatprep.subr.mxu0 0.0
        %1038 = vmatpush1.msra.mxu0 0.0
        %1039 = vmatprep.subr.mxu0 0.0
        %1040 = vmatpush1.msra.mxu0 0.0
        %1041 = vmatprep.subr.mxu0 0.0
        %1042 = vmatpush1.msra.mxu0 0.0
        %1043 = vmatprep.subr.mxu0 0.0
        %1044 = vmatpush1.msra.mxu0 %v1003
        %1045 = vmatprep.subr.mxu0 0.0
        %1046 = vmatpush1.msra.mxu0 %v1002
        %1047 = vmatprep.subr.mxu0 0.0
        %1048 = vmatpush1.msra.mxu0 %v1001
        %1049 = vmatprep.subr.mxu0 0.0
        %1050 = vmatpush2.msra.mxu0 0.0
        %1051 = vmatprep.subr.mxu0 0.0
        %1052 = vmatpush2.msra.mxu0 0.0
        %1053 = vmatprep.subr.mxu0 0.0
        %1054 = vmatpush2.msra.mxu0 0.0
        %1055 = vmatprep.subr.mxu0 0.0
        %1056 = vmatpush2.msra.mxu0 0.0
        %1057 = vmatprep.subr.mxu0 0.0
        %1058 = vmatpush2.msra.mxu0 0.0
        %1059 = vmatprep.subr.mxu0 0.0
        %1060 = vmatpush2.msra.mxu0 0.0
        %1061 = vmatprep.subr.mxu0 0.0
        %1062 = vmatpush2.msra.mxu0 0.0
        %1063 = vmatprep.subr.mxu0 0.0
        %1064 = vmatpush2.msra.mxu0 0.0
        %1065 = vmatprep.subr.mxu0 0.0
        %1066 = vmatpush2.msra.mxu0 0.0
        %1067 = vmatprep.subr.mxu0 0.0
        %1068 = vmatpush2.msra.mxu0 0.0
        %1069 = vmatprep.subr.mxu0 0.0
        %1070 = vmatpush2.msra.mxu0 0.0
        %1071 = vmatprep.subr.mxu0 0.0
        %1072 = vmatpush2.msra.mxu0 0.0
        %1073 = vmatprep.subr.mxu0 0.0
        %1074 = vmatpush2.msra.mxu0 0.0
        %1075 = vmatprep.subr.mxu0 0.0
        %1076 = vmatpush2.msra.mxu0 0.0
        %1077 = vmatprep.subr.mxu0 0.0
        %1078 = vmatpush2.msra.mxu0 0.0
        %1079 = vmatprep.subr.mxu0 0.0
        %1080 = vmatpush2.msra.mxu0 0.0
        %1081 = vmatprep.mubr.f32.mxu0 0.0
        %1082 = vmatmul.mubr.f32.gmra.mxu0 %v1012
        %v1083 = vpop.f32.mrf.mxu0
        %v1084 = vadd.f32 %v1009, %v1083
        %v1085 = vpop.f32.mrf.mxu0
        %1086 = vmatprep.mubr.f32.mxu0 0.0
        %1087 = vmatmul.mubr.f32.gmra.mxu0 %v1015
        %v1088 = vpop.f32.mrf.mxu0
        %v1089 = vadd.f32 %v1009, %v1088
        %v1090 = vpop.f32.mrf.mxu0
        %1091 = vdwg.mxu0
        %v1092 = vmax.f32 %v1084, 0.0
        %v1093 = vmax.f32 %v1089, 0.0
        %v1094 = vstv %s613
        %v1095 = vmul.f32 %v1092, %v1094
        %v1096 = vmul.f32 %v1093, %v1094
        %s1097 = scalar_lea.vmem [#allocation2], 216
        %1098 = vst.msk [vmem:[%s1097 + $0x1] sm:$0xff] %vm850, %v1095
        %1099 = vst.msk [vmem:[%s1097 + $0x9] sm:$0xff] %vm850, %v1096
        %v1100 = vld [vmem:[#allocation2] sm:$0xff]
        %v1101 = vld [vmem:[#allocation2 + $0x8] sm:$0xff]
        %v1102 = vld [vmem:[#allocation2 + $0x10] sm:$0x3]
        %v1103 = vld [vmem:[#allocation2 + $0x18] sm:$0xff]
        %v1104 = vld [vmem:[#allocation2 + $0x20] sm:$0xff]
        %v1105 = vld [vmem:[#allocation2 + $0x28] sm:$0x3]
        %v1106 = vld [vmem:[#allocation2 + $0x30] sm:$0xff]
        %v1107 = vld [vmem:[#allocation2 + $0x38] sm:$0xff]
        %v1108 = vld [vmem:[#allocation2 + $0x40] sm:$0x3]
        %v1109 = vld [vmem:[#allocation2 + $0x48] sm:$0xff]
        %v1110 = vld [vmem:[#allocation2 + $0x50] sm:$0xff]
        %v1111 = vld [vmem:[#allocation2 + $0x58] sm:$0x3]
        %v1112 = vld [vmem:[#allocation2 + $0x60] sm:$0xff]
        %v1113 = vld [vmem:[#allocation2 + $0x68] sm:$0xff]
        %v1114 = vld [vmem:[#allocation2 + $0x70] sm:$0x3]
        %v1115 = vld [vmem:[#allocation2 + $0x78] sm:$0xff]
        %v1116 = vld [vmem:[#allocation2 + $0x80] sm:$0xff]
        %v1117 = vld [vmem:[#allocation2 + $0x88] sm:$0x3]
        %v1118 = vld [vmem:[#allocation2 + $0x90] sm:$0xff]
        %v1119 = vld [vmem:[#allocation2 + $0x98] sm:$0xff]
        %v1120 = vld [vmem:[#allocation2 + $0xa0] sm:$0x3]
        %v1121 = vld [vmem:[#allocation2 + $0xa8] sm:$0xff]
        %v1122 = vld [vmem:[#allocation2 + $0xb0] sm:$0xff]
        %v1123 = vld [vmem:[#allocation2 + $0xb8] sm:$0x3]
        %v1124 = vld [vmem:[#allocation2 + $0xc0] sm:$0xff]
        %v1125 = vld [vmem:[#allocation2 + $0xc8] sm:$0xff]
        %v1126 = vld [vmem:[#allocation2 + $0xd0] sm:$0x3]
        %v1127 = vld [vmem:[#allocation2 + $0xd8] sm:$0xff]
        %v1128 = vld [vmem:[#allocation2 + $0xe0] sm:$0xff]
        %v1129 = vld [vmem:[#allocation2 + $0xe8] sm:$0x3]
        %v1130 = vld [vmem:[#allocation6] sm:$0x1]
        %v1131 = vlaneseq
        %v1132 = vshrl.u32 %v1131, 7
        %v1133 = vsub.s32 0, %v1132
        %v1134 = vrot.slane %v1130, %v1133
        %v1135 = vmul.f32 %v1100, %v1134
        %v1136 = vmul.f32 %v1101, %v1134
        %v1137 = vmul.f32 %v1103, %v1134
        %v1138 = vmul.f32 %v1104, %v1134
        %v1139 = vmul.f32 %v1106, %v1134
        %v1140 = vmul.f32 %v1107, %v1134
        %v1141 = vmul.f32 %v1109, %v1134
        %v1142 = vmul.f32 %v1110, %v1134
        %v1143 = vmul.f32 %v1112, %v1134
        %v1144 = vmul.f32 %v1113, %v1134
        %v1145 = vmul.f32 %v1115, %v1134
        %v1146 = vmul.f32 %v1116, %v1134
        %v1147 = vmul.f32 %v1118, %v1134
        %v1148 = vmul.f32 %v1119, %v1134
        %v1149 = vmul.f32 %v1121, %v1134
        %v1150 = vmul.f32 %v1122, %v1134
        %v1151 = vadd.f32 %v1135, 0.0
        %v1152 = vadd.f32 %v1136, 0.0
        %v1153 = vadd.f32 %v1137, 0.0
        %v1154 = vadd.f32 %v1138, 0.0
        %v1155 = vadd.f32 %v1139, 0.0
        %v1156 = vadd.f32 %v1140, 0.0
        %v1157 = vadd.f32 %v1141, 0.0
        %v1158 = vadd.f32 %v1142, 0.0
        %v1159 = vadd.f32 %v1143, 0.0
        %v1160 = vadd.f32 %v1144, 0.0
        %v1161 = vadd.f32 %v1145, 0.0
        %v1162 = vadd.f32 %v1146, 0.0
        %v1163 = vadd.f32 %v1147, 0.0
        %v1164 = vadd.f32 %v1148, 0.0
        %v1165 = vadd.f32 %v1149, 0.0
        %v1166 = vadd.f32 %v1150, 0.0
        %v1167 = vld [vmem:[#allocation6 + $0x1] sm:$0x1]
        %v1168 = vlaneseq
        %v1169 = vshrl.u32 %v1168, 7
        %v1170 = vsub.s32 0, %v1169
        %v1171 = vrot.slane %v1167, %v1170
        %v1172 = vmul.f32 %v1100, %v1171
        %v1173 = vmul.f32 %v1101, %v1171
        %v1174 = vmul.f32 %v1102, %v1171
        %v1175 = vmul.f32 %v1103, %v1171
        %v1176 = vmul.f32 %v1104, %v1171
        %v1177 = vmul.f32 %v1105, %v1171
        %v1178 = vmul.f32 %v1106, %v1171
        %v1179 = vmul.f32 %v1107, %v1171
        %v1180 = vmul.f32 %v1108, %v1171
        %v1181 = vmul.f32 %v1109, %v1171
        %v1182 = vmul.f32 %v1110, %v1171
        %v1183 = vmul.f32 %v1111, %v1171
        %v1184 = vmul.f32 %v1112, %v1171
        %v1185 = vmul.f32 %v1113, %v1171
        %v1186 = vmul.f32 %v1114, %v1171
        %v1187 = vmul.f32 %v1115, %v1171
        %v1188 = vmul.f32 %v1116, %v1171
        %v1189 = vmul.f32 %v1117, %v1171
        %v1190 = vmul.f32 %v1118, %v1171
        %v1191 = vmul.f32 %v1119, %v1171
        %v1192 = vmul.f32 %v1120, %v1171
        %v1193 = vmul.f32 %v1121, %v1171
        %v1194 = vmul.f32 %v1122, %v1171
        %v1195 = vmul.f32 %v1123, %v1171
        %vm1220 = vcmask 1046528
        %v1221 = vrot.slane %v1172, 1
        %v1222 = vrot.slane %v1173, 1
        %v1223 = vsel %vm1220, %v1221, %v1222
        %v1224 = vrot.slane %v1174, 1
        %v1225 = vsel %vm1220, %v1222, %v1224
        %v1226 = vrot.slane %v1175, 1
        %v1227 = vrot.slane %v1176, 1
        %v1228 = vsel %vm1220, %v1226, %v1227
        %v1229 = vrot.slane %v1177, 1
        %v1230 = vsel %vm1220, %v1227, %v1229
        %v1231 = vrot.slane %v1178, 1
        %v1232 = vrot.slane %v1179, 1
        %v1233 = vsel %vm1220, %v1231, %v1232
        %v1234 = vrot.slane %v1180, 1
        %v1235 = vsel %vm1220, %v1232, %v1234
        %v1236 = vrot.slane %v1181, 1
        %v1237 = vrot.slane %v1182, 1
        %v1238 = vsel %vm1220, %v1236, %v1237
        %v1239 = vrot.slane %v1183, 1
        %v1240 = vsel %vm1220, %v1237, %v1239
        %v1241 = vrot.slane %v1184, 1
        %v1242 = vrot.slane %v1185, 1
        %v1243 = vsel %vm1220, %v1241, %v1242
        %v1244 = vrot.slane %v1186, 1
        %v1245 = vsel %vm1220, %v1242, %v1244
        %v1246 = vrot.slane %v1187, 1
        %v1247 = vrot.slane %v1188, 1
        %v1248 = vsel %vm1220, %v1246, %v1247
        %v1249 = vrot.slane %v1189, 1
        %v1250 = vsel %vm1220, %v1247, %v1249
        %v1251 = vrot.slane %v1190, 1
        %v1252 = vrot.slane %v1191, 1
        %v1253 = vsel %vm1220, %v1251, %v1252
        %v1254 = vrot.slane %v1192, 1
        %v1255 = vsel %vm1220, %v1252, %v1254
        %v1256 = vrot.slane %v1193, 1
        %v1257 = vrot.slane %v1194, 1
        %v1258 = vsel %vm1220, %v1256, %v1257
        %v1259 = vrot.slane %v1195, 1
        %v1260 = vsel %vm1220, %v1257, %v1259
        %v1277 = vadd.f32 %v1151, %v1223
        %v1278 = vadd.f32 %v1152, %v1225
        %v1279 = vadd.f32 %v1153, %v1228
        %v1280 = vadd.f32 %v1154, %v1230
        %v1281 = vadd.f32 %v1155, %v1233
        %v1282 = vadd.f32 %v1156, %v1235
        %v1283 = vadd.f32 %v1157, %v1238
        %v1284 = vadd.f32 %v1158, %v1240
        %v1285 = vadd.f32 %v1159, %v1243
        %v1286 = vadd.f32 %v1160, %v1245
        %v1287 = vadd.f32 %v1161, %v1248
        %v1288 = vadd.f32 %v1162, %v1250
        %v1289 = vadd.f32 %v1163, %v1253
        %v1290 = vadd.f32 %v1164, %v1255
        %v1291 = vadd.f32 %v1165, %v1258
        %v1292 = vadd.f32 %v1166, %v1260
        %v1293 = vld [vmem:[#allocation6 + $0x2] sm:$0x1]
        %v1294 = vlaneseq
        %v1295 = vshrl.u32 %v1294, 7
        %v1296 = vsub.s32 0, %v1295
        %v1297 = vrot.slane %v1293, %v1296
        %v1298 = vmul.f32 %v1100, %v1297
        %v1299 = vmul.f32 %v1101, %v1297
        %v1300 = vmul.f32 %v1102, %v1297
        %v1301 = vmul.f32 %v1103, %v1297
        %v1302 = vmul.f32 %v1104, %v1297
        %v1303 = vmul.f32 %v1105, %v1297
        %v1304 = vmul.f32 %v1106, %v1297
        %v1305 = vmul.f32 %v1107, %v1297
        %v1306 = vmul.f32 %v1108, %v1297
        %v1307 = vmul.f32 %v1109, %v1297
        %v1308 = vmul.f32 %v1110, %v1297
        %v1309 = vmul.f32 %v1111, %v1297
        %v1310 = vmul.f32 %v1112, %v1297
        %v1311 = vmul.f32 %v1113, %v1297
        %v1312 = vmul.f32 %v1114, %v1297
        %v1313 = vmul.f32 %v1115, %v1297
        %v1314 = vmul.f32 %v1116, %v1297
        %v1315 = vmul.f32 %v1117, %v1297
        %v1316 = vmul.f32 %v1118, %v1297
        %v1317 = vmul.f32 %v1119, %v1297
        %v1318 = vmul.f32 %v1120, %v1297
        %v1319 = vmul.f32 %v1121, %v1297
        %v1320 = vmul.f32 %v1122, %v1297
        %v1321 = vmul.f32 %v1123, %v1297
        %vm1346 = vcmask 1045504
        %v1347 = vrot.slane %v1298, 2
        %v1348 = vrot.slane %v1299, 2
        %v1349 = vsel %vm1346, %v1347, %v1348
        %v1350 = vrot.slane %v1300, 2
        %v1351 = vsel %vm1346, %v1348, %v1350
        %v1352 = vrot.slane %v1301, 2
        %v1353 = vrot.slane %v1302, 2
        %v1354 = vsel %vm1346, %v1352, %v1353
        %v1355 = vrot.slane %v1303, 2
        %v1356 = vsel %vm1346, %v1353, %v1355
        %v1357 = vrot.slane %v1304, 2
        %v1358 = vrot.slane %v1305, 2
        %v1359 = vsel %vm1346, %v1357, %v1358
        %v1360 = vrot.slane %v1306, 2
        %v1361 = vsel %vm1346, %v1358, %v1360
        %v1362 = vrot.slane %v1307, 2
        %v1363 = vrot.slane %v1308, 2
        %v1364 = vsel %vm1346, %v1362, %v1363
        %v1365 = vrot.slane %v1309, 2
        %v1366 = vsel %vm1346, %v1363, %v1365
        %v1367 = vrot.slane %v1310, 2
        %v1368 = vrot.slane %v1311, 2
        %v1369 = vsel %vm1346, %v1367, %v1368
        %v1370 = vrot.slane %v1312, 2
        %v1371 = vsel %vm1346, %v1368, %v1370
        %v1372 = vrot.slane %v1313, 2
        %v1373 = vrot.slane %v1314, 2
        %v1374 = vsel %vm1346, %v1372, %v1373
        %v1375 = vrot.slane %v1315, 2
        %v1376 = vsel %vm1346, %v1373, %v1375
        %v1377 = vrot.slane %v1316, 2
        %v1378 = vrot.slane %v1317, 2
        %v1379 = vsel %vm1346, %v1377, %v1378
        %v1380 = vrot.slane %v1318, 2
        %v1381 = vsel %vm1346, %v1378, %v1380
        %v1382 = vrot.slane %v1319, 2
        %v1383 = vrot.slane %v1320, 2
        %v1384 = vsel %vm1346, %v1382, %v1383
        %v1385 = vrot.slane %v1321, 2
        %v1386 = vsel %vm1346, %v1383, %v1385
        %v1403 = vadd.f32 %v1277, %v1349
        %v1404 = vadd.f32 %v1278, %v1351
        %v1405 = vadd.f32 %v1279, %v1354
        %v1406 = vadd.f32 %v1280, %v1356
        %v1407 = vadd.f32 %v1281, %v1359
        %v1408 = vadd.f32 %v1282, %v1361
        %v1409 = vadd.f32 %v1283, %v1364
        %v1410 = vadd.f32 %v1284, %v1366
        %v1411 = vadd.f32 %v1285, %v1369
        %v1412 = vadd.f32 %v1286, %v1371
        %v1413 = vadd.f32 %v1287, %v1374
        %v1414 = vadd.f32 %v1288, %v1376
        %v1415 = vadd.f32 %v1289, %v1379
        %v1416 = vadd.f32 %v1290, %v1381
        %v1417 = vadd.f32 %v1291, %v1384
        %v1418 = vadd.f32 %v1292, %v1386
        %s1419 = scalar_lea.vmem [#allocation6], 4
        %v1420 = vld [vmem:[%s1419] sm:$0x1]
        %v1421 = vlaneseq
        %v1422 = vshrl.u32 %v1421, 7
        %v1423 = vsub.s32 0, %v1422
        %v1424 = vrot.slane %v1420, %v1423
        %v1425 = vmul.f32 %v1103, %v1424
        %v1426 = vmul.f32 %v1104, %v1424
        %v1427 = vmul.f32 %v1106, %v1424
        %v1428 = vmul.f32 %v1107, %v1424
        %v1429 = vmul.f32 %v1109, %v1424
        %v1430 = vmul.f32 %v1110, %v1424
        %v1431 = vmul.f32 %v1112, %v1424
        %v1432 = vmul.f32 %v1113, %v1424
        %v1433 = vmul.f32 %v1115, %v1424
        %v1434 = vmul.f32 %v1116, %v1424
        %v1435 = vmul.f32 %v1118, %v1424
        %v1436 = vmul.f32 %v1119, %v1424
        %v1437 = vmul.f32 %v1121, %v1424
        %v1438 = vmul.f32 %v1122, %v1424
        %v1439 = vmul.f32 %v1124, %v1424
        %v1440 = vmul.f32 %v1125, %v1424
        %v1441 = vadd.f32 %v1403, %v1425
        %v1442 = vadd.f32 %v1404, %v1426
        %v1443 = vadd.f32 %v1405, %v1427
        %v1444 = vadd.f32 %v1406, %v1428
        %v1445 = vadd.f32 %v1407, %v1429
        %v1446 = vadd.f32 %v1408, %v1430
        %v1447 = vadd.f32 %v1409, %v1431
        %v1448 = vadd.f32 %v1410, %v1432
        %v1449 = vadd.f32 %v1411, %v1433
        %v1450 = vadd.f32 %v1412, %v1434
        %v1451 = vadd.f32 %v1413, %v1435
        %v1452 = vadd.f32 %v1414, %v1436
        %v1453 = vadd.f32 %v1415, %v1437
        %v1454 = vadd.f32 %v1416, %v1438
        %v1455 = vadd.f32 %v1417, %v1439
        %v1456 = vadd.f32 %v1418, %v1440
        %v1457 = vld [vmem:[%s1419 + $0x1] sm:$0x1]
        %v1458 = vlaneseq
        %v1459 = vshrl.u32 %v1458, 7
        %v1460 = vsub.s32 0, %v1459
        %v1461 = vrot.slane %v1457, %v1460
        %v1462 = vmul.f32 %v1103, %v1461
        %v1463 = vmul.f32 %v1104, %v1461
        %v1464 = vmul.f32 %v1105, %v1461
        %v1465 = vmul.f32 %v1106, %v1461
        %v1466 = vmul.f32 %v1107, %v1461
        %v1467 = vmul.f32 %v1108, %v1461
        %v1468 = vmul.f32 %v1109, %v1461
        %v1469 = vmul.f32 %v1110, %v1461
        %v1470 = vmul.f32 %v1111, %v1461
        %v1471 = vmul.f32 %v1112, %v1461
        %v1472 = vmul.f32 %v1113, %v1461
        %v1473 = vmul.f32 %v1114, %v1461
        %v1474 = vmul.f32 %v1115, %v1461
        %v1475 = vmul.f32 %v1116, %v1461
        %v1476 = vmul.f32 %v1117, %v1461
        %v1477 = vmul.f32 %v1118, %v1461
        %v1478 = vmul.f32 %v1119, %v1461
        %v1479 = vmul.f32 %v1120, %v1461
        %v1480 = vmul.f32 %v1121, %v1461
        %v1481 = vmul.f32 %v1122, %v1461
        %v1482 = vmul.f32 %v1123, %v1461
        %v1483 = vmul.f32 %v1124, %v1461
        %v1484 = vmul.f32 %v1125, %v1461
        %v1485 = vmul.f32 %v1126, %v1461
        %v1510 = vrot.slane %v1462, 1
        %v1511 = vrot.slane %v1463, 1
        %v1512 = vsel %vm1220, %v1510, %v1511
        %v1513 = vrot.slane %v1464, 1
        %v1514 = vsel %vm1220, %v1511, %v1513
        %v1515 = vrot.slane %v1465, 1
        %v1516 = vrot.slane %v1466, 1
        %v1517 = vsel %vm1220, %v1515, %v1516
        %v1518 = vrot.slane %v1467, 1
        %v1519 = vsel %vm1220, %v1516, %v1518
        %v1520 = vrot.slane %v1468, 1
        %v1521 = vrot.slane %v1469, 1
        %v1522 = vsel %vm1220, %v1520, %v1521
        %v1523 = vrot.slane %v1470, 1
        %v1524 = vsel %vm1220, %v1521, %v1523
        %v1525 = vrot.slane %v1471, 1
        %v1526 = vrot.slane %v1472, 1
        %v1527 = vsel %vm1220, %v1525, %v1526
        %v1528 = vrot.slane %v1473, 1
        %v1529 = vsel %vm1220, %v1526, %v1528
        %v1530 = vrot.slane %v1474, 1
        %v1531 = vrot.slane %v1475, 1
        %v1532 = vsel %vm1220, %v1530, %v1531
        %v1533 = vrot.slane %v1476, 1
        %v1534 = vsel %vm1220, %v1531, %v1533
        %v1535 = vrot.slane %v1477, 1
        %v1536 = vrot.slane %v1478, 1
        %v1537 = vsel %vm1220, %v1535, %v1536
        %v1538 = vrot.slane %v1479, 1
        %v1539 = vsel %vm1220, %v1536, %v1538
        %v1540 = vrot.slane %v1480, 1
        %v1541 = vrot.slane %v1481, 1
        %v1542 = vsel %vm1220, %v1540, %v1541
        %v1543 = vrot.slane %v1482, 1
        %v1544 = vsel %vm1220, %v1541, %v1543
        %v1545 = vrot.slane %v1483, 1
        %v1546 = vrot.slane %v1484, 1
        %v1547 = vsel %vm1220, %v1545, %v1546
        %v1548 = vrot.slane %v1485, 1
        %v1549 = vsel %vm1220, %v1546, %v1548
        %v1566 = vadd.f32 %v1441, %v1512
        %v1567 = vadd.f32 %v1442, %v1514
        %v1568 = vadd.f32 %v1443, %v1517
        %v1569 = vadd.f32 %v1444, %v1519
        %v1570 = vadd.f32 %v1445, %v1522
        %v1571 = vadd.f32 %v1446, %v1524
        %v1572 = vadd.f32 %v1447, %v1527
        %v1573 = vadd.f32 %v1448, %v1529
        %v1574 = vadd.f32 %v1449, %v1532
        %v1575 = vadd.f32 %v1450, %v1534
        %v1576 = vadd.f32 %v1451, %v1537
        %v1577 = vadd.f32 %v1452, %v1539
        %v1578 = vadd.f32 %v1453, %v1542
        %v1579 = vadd.f32 %v1454, %v1544
        %v1580 = vadd.f32 %v1455, %v1547
        %v1581 = vadd.f32 %v1456, %v1549
        %v1582 = vld [vmem:[%s1419 + $0x2] sm:$0x1]
        %v1583 = vlaneseq
        %v1584 = vshrl.u32 %v1583, 7
        %v1585 = vsub.s32 0, %v1584
        %v1586 = vrot.slane %v1582, %v1585
        %v1587 = vmul.f32 %v1103, %v1586
        %v1588 = vmul.f32 %v1104, %v1586
        %v1589 = vmul.f32 %v1105, %v1586
        %v1590 = vmul.f32 %v1106, %v1586
        %v1591 = vmul.f32 %v1107, %v1586
        %v1592 = vmul.f32 %v1108, %v1586
        %v1593 = vmul.f32 %v1109, %v1586
        %v1594 = vmul.f32 %v1110, %v1586
        %v1595 = vmul.f32 %v1111, %v1586
        %v1596 = vmul.f32 %v1112, %v1586
        %v1597 = vmul.f32 %v1113, %v1586
        %v1598 = vmul.f32 %v1114, %v1586
        %v1599 = vmul.f32 %v1115, %v1586
        %v1600 = vmul.f32 %v1116, %v1586
        %v1601 = vmul.f32 %v1117, %v1586
        %v1602 = vmul.f32 %v1118, %v1586
        %v1603 = vmul.f32 %v1119, %v1586
        %v1604 = vmul.f32 %v1120, %v1586
        %v1605 = vmul.f32 %v1121, %v1586
        %v1606 = vmul.f32 %v1122, %v1586
        %v1607 = vmul.f32 %v1123, %v1586
        %v1608 = vmul.f32 %v1124, %v1586
        %v1609 = vmul.f32 %v1125, %v1586
        %v1610 = vmul.f32 %v1126, %v1586
        %v1635 = vrot.slane %v1587, 2
        %v1636 = vrot.slane %v1588, 2
        %v1637 = vsel %vm1346, %v1635, %v1636
        %v1638 = vrot.slane %v1589, 2
        %v1639 = vsel %vm1346, %v1636, %v1638
        %v1640 = vrot.slane %v1590, 2
        %v1641 = vrot.slane %v1591, 2
        %v1642 = vsel %vm1346, %v1640, %v1641
        %v1643 = vrot.slane %v1592, 2
        %v1644 = vsel %vm1346, %v1641, %v1643
        %v1645 = vrot.slane %v1593, 2
        %v1646 = vrot.slane %v1594, 2
        %v1647 = vsel %vm1346, %v1645, %v1646
        %v1648 = vrot.slane %v1595, 2
        %v1649 = vsel %vm1346, %v1646, %v1648
        %v1650 = vrot.slane %v1596, 2
        %v1651 = vrot.slane %v1597, 2
        %v1652 = vsel %vm1346, %v1650, %v1651
        %v1653 = vrot.slane %v1598, 2
        %v1654 = vsel %vm1346, %v1651, %v1653
        %v1655 = vrot.slane %v1599, 2
        %v1656 = vrot.slane %v1600, 2
        %v1657 = vsel %vm1346, %v1655, %v1656
        %v1658 = vrot.slane %v1601, 2
        %v1659 = vsel %vm1346, %v1656, %v1658
        %v1660 = vrot.slane %v1602, 2
        %v1661 = vrot.slane %v1603, 2
        %v1662 = vsel %vm1346, %v1660, %v1661
        %v1663 = vrot.slane %v1604, 2
        %v1664 = vsel %vm1346, %v1661, %v1663
        %v1665 = vrot.slane %v1605, 2
        %v1666 = vrot.slane %v1606, 2
        %v1667 = vsel %vm1346, %v1665, %v1666
        %v1668 = vrot.slane %v1607, 2
        %v1669 = vsel %vm1346, %v1666, %v1668
        %v1670 = vrot.slane %v1608, 2
        %v1671 = vrot.slane %v1609, 2
        %v1672 = vsel %vm1346, %v1670, %v1671
        %v1673 = vrot.slane %v1610, 2
        %v1674 = vsel %vm1346, %v1671, %v1673
        %v1691 = vadd.f32 %v1566, %v1637
        %v1692 = vadd.f32 %v1567, %v1639
        %v1693 = vadd.f32 %v1568, %v1642
        %v1694 = vadd.f32 %v1569, %v1644
        %v1695 = vadd.f32 %v1570, %v1647
        %v1696 = vadd.f32 %v1571, %v1649
        %v1697 = vadd.f32 %v1572, %v1652
        %v1698 = vadd.f32 %v1573, %v1654
        %v1699 = vadd.f32 %v1574, %v1657
        %v1700 = vadd.f32 %v1575, %v1659
        %v1701 = vadd.f32 %v1576, %v1662
        %v1702 = vadd.f32 %v1577, %v1664
        %v1703 = vadd.f32 %v1578, %v1667
        %v1704 = vadd.f32 %v1579, %v1669
        %v1705 = vadd.f32 %v1580, %v1672
        %v1706 = vadd.f32 %v1581, %v1674
        %s1707 = scalar_lea.vmem [#allocation6], 8
        %v1708 = vld [vmem:[%s1707] sm:$0x1]
        %v1709 = vlaneseq
        %v1710 = vshrl.u32 %v1709, 7
        %v1711 = vsub.s32 0, %v1710
        %v1712 = vrot.slane %v1708, %v1711
        %v1713 = vmul.f32 %v1106, %v1712
        %v1714 = vmul.f32 %v1107, %v1712
        %v1715 = vmul.f32 %v1109, %v1712
        %v1716 = vmul.f32 %v1110, %v1712
        %v1717 = vmul.f32 %v1112, %v1712
        %v1718 = vmul.f32 %v1113, %v1712
        %v1719 = vmul.f32 %v1115, %v1712
        %v1720 = vmul.f32 %v1116, %v1712
        %v1721 = vmul.f32 %v1118, %v1712
        %v1722 = vmul.f32 %v1119, %v1712
        %v1723 = vmul.f32 %v1121, %v1712
        %v1724 = vmul.f32 %v1122, %v1712
        %v1725 = vmul.f32 %v1124, %v1712
        %v1726 = vmul.f32 %v1125, %v1712
        %v1727 = vmul.f32 %v1127, %v1712
        %v1728 = vmul.f32 %v1128, %v1712
        %v1729 = vadd.f32 %v1691, %v1713
        %v1730 = vadd.f32 %v1692, %v1714
        %v1731 = vadd.f32 %v1693, %v1715
        %v1732 = vadd.f32 %v1694, %v1716
        %v1733 = vadd.f32 %v1695, %v1717
        %v1734 = vadd.f32 %v1696, %v1718
        %v1735 = vadd.f32 %v1697, %v1719
        %v1736 = vadd.f32 %v1698, %v1720
        %v1737 = vadd.f32 %v1699, %v1721
        %v1738 = vadd.f32 %v1700, %v1722
        %v1739 = vadd.f32 %v1701, %v1723
        %v1740 = vadd.f32 %v1702, %v1724
        %v1741 = vadd.f32 %v1703, %v1725
        %v1742 = vadd.f32 %v1704, %v1726
        %v1743 = vadd.f32 %v1705, %v1727
        %v1744 = vadd.f32 %v1706, %v1728
        %v1745 = vld [vmem:[%s1707 + $0x1] sm:$0x1]
        %v1746 = vlaneseq
        %v1747 = vshrl.u32 %v1746, 7
        %v1748 = vsub.s32 0, %v1747
        %v1749 = vrot.slane %v1745, %v1748
        %v1750 = vmul.f32 %v1106, %v1749
        %v1751 = vmul.f32 %v1107, %v1749
        %v1752 = vmul.f32 %v1108, %v1749
        %v1753 = vmul.f32 %v1109, %v1749
        %v1754 = vmul.f32 %v1110, %v1749
        %v1755 = vmul.f32 %v1111, %v1749
        %v1756 = vmul.f32 %v1112, %v1749
        %v1757 = vmul.f32 %v1113, %v1749
        %v1758 = vmul.f32 %v1114, %v1749
        %v1759 = vmul.f32 %v1115, %v1749
        %v1760 = vmul.f32 %v1116, %v1749
        %v1761 = vmul.f32 %v1117, %v1749
        %v1762 = vmul.f32 %v1118, %v1749
        %v1763 = vmul.f32 %v1119, %v1749
        %v1764 = vmul.f32 %v1120, %v1749
        %v1765 = vmul.f32 %v1121, %v1749
        %v1766 = vmul.f32 %v1122, %v1749
        %v1767 = vmul.f32 %v1123, %v1749
        %v1768 = vmul.f32 %v1124, %v1749
        %v1769 = vmul.f32 %v1125, %v1749
        %v1770 = vmul.f32 %v1126, %v1749
        %v1771 = vmul.f32 %v1127, %v1749
        %v1772 = vmul.f32 %v1128, %v1749
        %v1773 = vmul.f32 %v1129, %v1749
        %v1798 = vrot.slane %v1750, 1
        %v1799 = vrot.slane %v1751, 1
        %v1800 = vsel %vm1220, %v1798, %v1799
        %v1801 = vrot.slane %v1752, 1
        %v1802 = vsel %vm1220, %v1799, %v1801
        %v1803 = vrot.slane %v1753, 1
        %v1804 = vrot.slane %v1754, 1
        %v1805 = vsel %vm1220, %v1803, %v1804
        %v1806 = vrot.slane %v1755, 1
        %v1807 = vsel %vm1220, %v1804, %v1806
        %v1808 = vrot.slane %v1756, 1
        %v1809 = vrot.slane %v1757, 1
        %v1810 = vsel %vm1220, %v1808, %v1809
        %v1811 = vrot.slane %v1758, 1
        %v1812 = vsel %vm1220, %v1809, %v1811
        %v1813 = vrot.slane %v1759, 1
        %v1814 = vrot.slane %v1760, 1
        %v1815 = vsel %vm1220, %v1813, %v1814
        %v1816 = vrot.slane %v1761, 1
        %v1817 = vsel %vm1220, %v1814, %v1816
        %v1818 = vrot.slane %v1762, 1
        %v1819 = vrot.slane %v1763, 1
        %v1820 = vsel %vm1220, %v1818, %v1819
        %v1821 = vrot.slane %v1764, 1
        %v1822 = vsel %vm1220, %v1819, %v1821
        %v1823 = vrot.slane %v1765, 1
        %v1824 = vrot.slane %v1766, 1
        %v1825 = vsel %vm1220, %v1823, %v1824
        %v1826 = vrot.slane %v1767, 1
        %v1827 = vsel %vm1220, %v1824, %v1826
        %v1828 = vrot.slane %v1768, 1
        %v1829 = vrot.slane %v1769, 1
        %v1830 = vsel %vm1220, %v1828, %v1829
        %v1831 = vrot.slane %v1770, 1
        %v1832 = vsel %vm1220, %v1829, %v1831
        %v1833 = vrot.slane %v1771, 1
        %v1834 = vrot.slane %v1772, 1
        %v1835 = vsel %vm1220, %v1833, %v1834
        %v1836 = vrot.slane %v1773, 1
        %v1837 = vsel %vm1220, %v1834, %v1836
        %v1854 = vadd.f32 %v1729, %v1800
        %v1855 = vadd.f32 %v1730, %v1802
        %v1856 = vadd.f32 %v1731, %v1805
        %v1857 = vadd.f32 %v1732, %v1807
        %v1858 = vadd.f32 %v1733, %v1810
        %v1859 = vadd.f32 %v1734, %v1812
        %v1860 = vadd.f32 %v1735, %v1815
        %v1861 = vadd.f32 %v1736, %v1817
        %v1862 = vadd.f32 %v1737, %v1820
        %v1863 = vadd.f32 %v1738, %v1822
        %v1864 = vadd.f32 %v1739, %v1825
        %v1865 = vadd.f32 %v1740, %v1827
        %v1866 = vadd.f32 %v1741, %v1830
        %v1867 = vadd.f32 %v1742, %v1832
        %v1868 = vadd.f32 %v1743, %v1835
        %v1869 = vadd.f32 %v1744, %v1837
        %v1870 = vld [vmem:[%s1707 + $0x2] sm:$0x1]
        %v1871 = vlaneseq
        %v1872 = vshrl.u32 %v1871, 7
        %v1873 = vsub.s32 0, %v1872
        %v1874 = vrot.slane %v1870, %v1873
        %v1875 = vmul.f32 %v1106, %v1874
        %v1876 = vmul.f32 %v1107, %v1874
        %v1877 = vmul.f32 %v1108, %v1874
        %v1878 = vmul.f32 %v1109, %v1874
        %v1879 = vmul.f32 %v1110, %v1874
        %v1880 = vmul.f32 %v1111, %v1874
        %v1881 = vmul.f32 %v1112, %v1874
        %v1882 = vmul.f32 %v1113, %v1874
        %v1883 = vmul.f32 %v1114, %v1874
        %v1884 = vmul.f32 %v1115, %v1874
        %v1885 = vmul.f32 %v1116, %v1874
        %v1886 = vmul.f32 %v1117, %v1874
        %v1887 = vmul.f32 %v1118, %v1874
        %v1888 = vmul.f32 %v1119, %v1874
        %v1889 = vmul.f32 %v1120, %v1874
        %v1890 = vmul.f32 %v1121, %v1874
        %v1891 = vmul.f32 %v1122, %v1874
        %v1892 = vmul.f32 %v1123, %v1874
        %v1893 = vmul.f32 %v1124, %v1874
        %v1894 = vmul.f32 %v1125, %v1874
        %v1895 = vmul.f32 %v1126, %v1874
        %v1896 = vmul.f32 %v1127, %v1874
        %v1897 = vmul.f32 %v1128, %v1874
        %v1898 = vmul.f32 %v1129, %v1874
        %v1923 = vrot.slane %v1875, 2
        %v1924 = vrot.slane %v1876, 2
        %v1925 = vsel %vm1346, %v1923, %v1924
        %v1926 = vrot.slane %v1877, 2
        %v1927 = vsel %vm1346, %v1924, %v1926
        %v1928 = vrot.slane %v1878, 2
        %v1929 = vrot.slane %v1879, 2
        %v1930 = vsel %vm1346, %v1928, %v1929
        %v1931 = vrot.slane %v1880, 2
        %v1932 = vsel %vm1346, %v1929, %v1931
        %v1933 = vrot.slane %v1881, 2
        %v1934 = vrot.slane %v1882, 2
        %v1935 = vsel %vm1346, %v1933, %v1934
        %v1936 = vrot.slane %v1883, 2
        %v1937 = vsel %vm1346, %v1934, %v1936
        %v1938 = vrot.slane %v1884, 2
        %v1939 = vrot.slane %v1885, 2
        %v1940 = vsel %vm1346, %v1938, %v1939
        %v1941 = vrot.slane %v1886, 2
        %v1942 = vsel %vm1346, %v1939, %v1941
        %v1943 = vrot.slane %v1887, 2
        %v1944 = vrot.slane %v1888, 2
        %v1945 = vsel %vm1346, %v1943, %v1944
        %v1946 = vrot.slane %v1889, 2
        %v1947 = vsel %vm1346, %v1944, %v1946
        %v1948 = vrot.slane %v1890, 2
        %v1949 = vrot.slane %v1891, 2
        %v1950 = vsel %vm1346, %v1948, %v1949
        %v1951 = vrot.slane %v1892, 2
        %v1952 = vsel %vm1346, %v1949, %v1951
        %v1953 = vrot.slane %v1893, 2
        %v1954 = vrot.slane %v1894, 2
        %v1955 = vsel %vm1346, %v1953, %v1954
        %v1956 = vrot.slane %v1895, 2
        %v1957 = vsel %vm1346, %v1954, %v1956
        %v1958 = vrot.slane %v1896, 2
        %v1959 = vrot.slane %v1897, 2
        %v1960 = vsel %vm1346, %v1958, %v1959
        %v1961 = vrot.slane %v1898, 2
        %v1962 = vsel %vm1346, %v1959, %v1961
        %v1979 = vadd.f32 %v1854, %v1925
        %v1980 = vadd.f32 %v1855, %v1927
        %v1981 = vadd.f32 %v1856, %v1930
        %v1982 = vadd.f32 %v1857, %v1932
        %v1983 = vadd.f32 %v1858, %v1935
        %v1984 = vadd.f32 %v1859, %v1937
        %v1985 = vadd.f32 %v1860, %v1940
        %v1986 = vadd.f32 %v1861, %v1942
        %v1987 = vadd.f32 %v1862, %v1945
        %v1988 = vadd.f32 %v1863, %v1947
        %v1989 = vadd.f32 %v1864, %v1950
        %v1990 = vadd.f32 %v1865, %v1952
        %v1991 = vadd.f32 %v1866, %v1955
        %v1992 = vadd.f32 %v1867, %v1957
        %v1993 = vadd.f32 %v1868, %v1960
        %v1994 = vadd.f32 %v1869, %v1962
        %v1995 = vld [vmem:[#allocation8] sm:$0x1]
        %v1997 = vlaneseq
        %v1998 = vshrl.u32 %v1997, 7
        %v1999 = vsub.s32 0, %v1998
        %v2000 = vrot.slane %v1995, %v1999
        %v2002 = vadd.f32 %v1979, %v2000
        %v2003 = vadd.f32 %v1980, %v2000
        %v2004 = vadd.f32 %v1981, %v2000
        %v2005 = vadd.f32 %v1982, %v2000
        %v2006 = vadd.f32 %v1983, %v2000
        %v2007 = vadd.f32 %v1984, %v2000
        %v2008 = vadd.f32 %v1985, %v2000
        %v2009 = vadd.f32 %v1986, %v2000
        %v2010 = vadd.f32 %v1987, %v2000
        %v2011 = vadd.f32 %v1988, %v2000
        %v2012 = vadd.f32 %v1989, %v2000
        %v2013 = vadd.f32 %v1990, %v2000
        %v2014 = vadd.f32 %v1991, %v2000
        %v2015 = vadd.f32 %v1992, %v2000
        %v2016 = vadd.f32 %v1993, %v2000
        %v2017 = vadd.f32 %v1994, %v2000
        %v2018 = vld [vmem:[%s7] sm:$0xff]
        %v2019 = vld [vmem:[%s7 + $0x8] sm:$0xf]
        %v2020 = vld [vmem:[#allocation9] sm:$0x1]
        %v2022 = vlaneseq
        %v2023 = vshrl.u32 %v2022, 7
        %v2024 = vsub.s32 0, %v2023
        %v2025 = vrot.slane %v2020, %v2024
        %v2028 = vsel %vm850, %v2002, 0
        %v2031 = vsel %vm850, %v2003, 0
        %v2034 = vsel %vm850, %v2004, 0
        %v2037 = vsel %vm850, %v2005, 0
        %v2040 = vsel %vm850, %v2006, 0
        %v2043 = vsel %vm850, %v2007, 0
        %v2046 = vsel %vm850, %v2008, 0
        %v2049 = vsel %vm850, %v2009, 0
        %v2052 = vsel %vm850, %v2010, 0
        %v2055 = vsel %vm850, %v2011, 0
        %v2058 = vsel %vm850, %v2012, 0
        %v2061 = vsel %vm850, %v2013, 0
        %v2064 = vsel %vm850, %v2014, 0
        %v2067 = vsel %vm850, %v2015, 0
        %v2070 = vsel %vm850, %v2016, 0
        %v2073 = vsel %vm850, %v2017, 0
        %vm2075 = vcmask 1043456
        %v2077 = vsel %vm2075, %v2019, 0
        %2079 = vmatprep.subr.mxu0 0.0
        %2080 = vmatpush1.msra.mxu0 0.0
        %2081 = vmatprep.subr.mxu0 0.0
        %2082 = vmatpush1.msra.mxu0 0.0
        %2083 = vmatprep.subr.mxu0 0.0
        %2084 = vmatpush1.msra.mxu0 0.0
        %2085 = vmatprep.subr.mxu0 0.0
        %2086 = vmatpush1.msra.mxu0 0.0
        %2087 = vmatprep.subr.mxu0 0.0
        %2088 = vmatpush1.msra.mxu0 0.0
        %2089 = vmatprep.subr.mxu0 0.0
        %2090 = vmatpush1.msra.mxu0 0.0
        %2091 = vmatprep.subr.mxu0 0.0
        %2092 = vmatpush1.msra.mxu0 0.0
        %2093 = vmatprep.subr.mxu0 0.0
        %2094 = vmatpush1.msra.mxu0 0.0
        %2095 = vmatprep.subr.mxu0 0.0
        %2096 = vmatpush1.msra.mxu0 0.0
        %2097 = vmatprep.subr.mxu0 0.0
        %2098 = vmatpush1.msra.mxu0 0.0
        %2099 = vmatprep.subr.mxu0 0.0
        %2100 = vmatpush1.msra.mxu0 0.0
        %2101 = vmatprep.subr.mxu0 0.0
        %2102 = vmatpush1.msra.mxu0 0.0
        %2103 = vmatprep.subr.mxu0 0.0
        %2104 = vmatpush1.msra.mxu0 0.0
        %2105 = vmatprep.subr.mxu0 0.0
        %2106 = vmatpush1.msra.mxu0 0.0
        %2107 = vmatprep.subr.mxu0 0.0
        %2108 = vmatpush1.msra.mxu0 %v2077
        %2109 = vmatprep.subr.mxu0 0.0
        %2110 = vmatpush1.msra.mxu0 %v2018
        %2111 = vmatprep.subr.mxu0 0.0
        %2112 = vmatpush2.msra.mxu0 0.0
        %2113 = vmatprep.subr.mxu0 0.0
        %2114 = vmatpush2.msra.mxu0 0.0
        %2115 = vmatprep.subr.mxu0 0.0
        %2116 = vmatpush2.msra.mxu0 0.0
        %2117 = vmatprep.subr.mxu0 0.0
        %2118 = vmatpush2.msra.mxu0 0.0
        %2119 = vmatprep.subr.mxu0 0.0
        %2120 = vmatpush2.msra.mxu0 0.0
        %2121 = vmatprep.subr.mxu0 0.0
        %2122 = vmatpush2.msra.mxu0 0.0
        %2123 = vmatprep.subr.mxu0 0.0
        %2124 = vmatpush2.msra.mxu0 0.0
        %2125 = vmatprep.subr.mxu0 0.0
        %2126 = vmatpush2.msra.mxu0 0.0
        %2127 = vmatprep.subr.mxu0 0.0
        %2128 = vmatpush2.msra.mxu0 0.0
        %2129 = vmatprep.subr.mxu0 0.0
        %2130 = vmatpush2.msra.mxu0 0.0
        %2131 = vmatprep.subr.mxu0 0.0
        %2132 = vmatpush2.msra.mxu0 0.0
        %2133 = vmatprep.subr.mxu0 0.0
        %2134 = vmatpush2.msra.mxu0 0.0
        %2135 = vmatprep.subr.mxu0 0.0
        %2136 = vmatpush2.msra.mxu0 0.0
        %2137 = vmatprep.subr.mxu0 0.0
        %2138 = vmatpush2.msra.mxu0 0.0
        %2139 = vmatprep.subr.mxu0 0.0
        %2140 = vmatpush2.msra.mxu0 0.0
        %2141 = vmatprep.subr.mxu0 0.0
        %2142 = vmatpush2.msra.mxu0 0.0
        %2143 = vmatprep.mubr.f32.mxu0 0.0
        %2144 = vmatmul.mubr.f32.gmra.mxu0 %v2028
        %v2145 = vpop.f32.mrf.mxu0
        %v2146 = vadd.f32 %v2025, %v2145
        %v2147 = vpop.f32.mrf.mxu0
        %2148 = vmatprep.mubr.f32.mxu0 0.0
        %2149 = vmatmul.mubr.f32.gmra.mxu0 %v2031
        %v2150 = vpop.f32.mrf.mxu0
        %v2151 = vadd.f32 %v2025, %v2150
        %v2152 = vpop.f32.mrf.mxu0
        %2153 = vmatprep.mubr.f32.mxu0 0.0
        %2154 = vmatmul.mubr.f32.gmra.mxu0 %v2034
        %v2155 = vpop.f32.mrf.mxu0
        %v2156 = vadd.f32 %v2025, %v2155
        %v2157 = vpop.f32.mrf.mxu0
        %2158 = vmatprep.mubr.f32.mxu0 0.0
        %2159 = vmatmul.mubr.f32.gmra.mxu0 %v2037
        %v2160 = vpop.f32.mrf.mxu0
        %v2161 = vadd.f32 %v2025, %v2160
        %v2162 = vpop.f32.mrf.mxu0
        %2163 = vmatprep.mubr.f32.mxu0 0.0
        %2164 = vmatmul.mubr.f32.gmra.mxu0 %v2040
        %v2165 = vpop.f32.mrf.mxu0
        %v2166 = vadd.f32 %v2025, %v2165
        %v2167 = vpop.f32.mrf.mxu0
        %2168 = vmatprep.mubr.f32.mxu0 0.0
        %2169 = vmatmul.mubr.f32.gmra.mxu0 %v2043
        %v2170 = vpop.f32.mrf.mxu0
        %v2171 = vadd.f32 %v2025, %v2170
        %v2172 = vpop.f32.mrf.mxu0
        %2173 = vmatprep.mubr.f32.mxu0 0.0
        %2174 = vmatmul.mubr.f32.gmra.mxu0 %v2046
        %v2175 = vpop.f32.mrf.mxu0
        %v2176 = vadd.f32 %v2025, %v2175
        %v2177 = vpop.f32.mrf.mxu0
        %2178 = vmatprep.mubr.f32.mxu0 0.0
        %2179 = vmatmul.mubr.f32.gmra.mxu0 %v2049
        %v2180 = vpop.f32.mrf.mxu0
        %v2181 = vadd.f32 %v2025, %v2180
        %v2182 = vpop.f32.mrf.mxu0
        %2183 = vmatprep.mubr.f32.mxu0 0.0
        %2184 = vmatmul.mubr.f32.gmra.mxu0 %v2052
        %v2185 = vpop.f32.mrf.mxu0
        %v2186 = vadd.f32 %v2025, %v2185
        %v2187 = vpop.f32.mrf.mxu0
        %2188 = vmatprep.mubr.f32.mxu0 0.0
        %2189 = vmatmul.mubr.f32.gmra.mxu0 %v2055
        %v2190 = vpop.f32.mrf.mxu0
        %v2191 = vadd.f32 %v2025, %v2190
        %v2192 = vpop.f32.mrf.mxu0
        %2193 = vmatprep.mubr.f32.mxu0 0.0
        %2194 = vmatmul.mubr.f32.gmra.mxu0 %v2058
        %v2195 = vpop.f32.mrf.mxu0
        %v2196 = vadd.f32 %v2025, %v2195
        %v2197 = vpop.f32.mrf.mxu0
        %2198 = vmatprep.mubr.f32.mxu0 0.0
        %2199 = vmatmul.mubr.f32.gmra.mxu0 %v2061
        %v2200 = vpop.f32.mrf.mxu0
        %v2201 = vadd.f32 %v2025, %v2200
        %v2202 = vpop.f32.mrf.mxu0
        %2203 = vmatprep.mubr.f32.mxu0 0.0
        %2204 = vmatmul.mubr.f32.gmra.mxu0 %v2064
        %v2205 = vpop.f32.mrf.mxu0
        %v2206 = vadd.f32 %v2025, %v2205
        %v2207 = vpop.f32.mrf.mxu0
        %2208 = vmatprep.mubr.f32.mxu0 0.0
        %2209 = vmatmul.mubr.f32.gmra.mxu0 %v2067
        %v2210 = vpop.f32.mrf.mxu0
        %v2211 = vadd.f32 %v2025, %v2210
        %v2212 = vpop.f32.mrf.mxu0
        %2213 = vmatprep.mubr.f32.mxu0 0.0
        %2214 = vmatmul.mubr.f32.gmra.mxu0 %v2070
        %v2215 = vpop.f32.mrf.mxu0
        %v2216 = vadd.f32 %v2025, %v2215
        %v2217 = vpop.f32.mrf.mxu0
        %2218 = vmatprep.mubr.f32.mxu0 0.0
        %2219 = vmatmul.mubr.f32.gmra.mxu0 %v2073
        %v2220 = vpop.f32.mrf.mxu0
        %v2221 = vadd.f32 %v2025, %v2220
        %v2222 = vpop.f32.mrf.mxu0
        %2223 = vdwg.mxu0
        %v2224 = vmax.f32 %v2146, 0.0
        %v2225 = vmax.f32 %v2151, 0.0
        %v2226 = vmax.f32 %v2156, 0.0
        %v2227 = vmax.f32 %v2161, 0.0
        %v2228 = vmax.f32 %v2166, 0.0
        %v2229 = vmax.f32 %v2171, 0.0
        %v2230 = vmax.f32 %v2176, 0.0
        %v2231 = vmax.f32 %v2181, 0.0
        %v2232 = vmax.f32 %v2186, 0.0
        %v2233 = vmax.f32 %v2191, 0.0
        %v2234 = vmax.f32 %v2196, 0.0
        %v2235 = vmax.f32 %v2201, 0.0
        %v2236 = vmax.f32 %v2206, 0.0
        %v2237 = vmax.f32 %v2211, 0.0
        %v2238 = vmax.f32 %v2216, 0.0
        %v2239 = vmax.f32 %v2221, 0.0
        %v2240 = vld [vmem:[%s9] sm:$0xff]
        %v2241 = vld [vmem:[%s9 + $0x8] sm:$0xff]
        %v2242 = vld [vmem:[%s9 + $0x10] sm:$0xff]
        %v2243 = vld [vmem:[#allocation11] sm:$0x1]
        %v2245 = vlaneseq
        %v2246 = vshrl.u32 %v2245, 7
        %v2247 = vsub.s32 0, %v2246
        %v2248 = vrot.slane %v2243, %v2247
        %2250 = vmatprep.subr.mxu0 0.0
        %2251 = vmatpush1.msra.mxu0 0.0
        %2252 = vmatprep.subr.mxu0 0.0
        %2253 = vmatpush1.msra.mxu0 0.0
        %2254 = vmatprep.subr.mxu0 0.0
        %2255 = vmatpush1.msra.mxu0 0.0
        %2256 = vmatprep.subr.mxu0 0.0
        %2257 = vmatpush1.msra.mxu0 0.0
        %2258 = vmatprep.subr.mxu0 0.0
        %2259 = vmatpush1.msra.mxu0 0.0
        %2260 = vmatprep.subr.mxu0 0.0
        %2261 = vmatpush1.msra.mxu0 0.0
        %2262 = vmatprep.subr.mxu0 0.0
        %2263 = vmatpush1.msra.mxu0 0.0
        %2264 = vmatprep.subr.mxu0 0.0
        %2265 = vmatpush1.msra.mxu0 0.0
        %2266 = vmatprep.subr.mxu0 0.0
        %2267 = vmatpush1.msra.mxu0 0.0
        %2268 = vmatprep.subr.mxu0 0.0
        %2269 = vmatpush1.msra.mxu0 0.0
        %2270 = vmatprep.subr.mxu0 0.0
        %2271 = vmatpush1.msra.mxu0 0.0
        %2272 = vmatprep.subr.mxu0 0.0
        %2273 = vmatpush1.msra.mxu0 0.0
        %2274 = vmatprep.subr.mxu0 0.0
        %2275 = vmatpush1.msra.mxu0 0.0
        %2276 = vmatprep.subr.mxu0 0.0
        %2277 = vmatpush1.msra.mxu0 %v2242
        %2278 = vmatprep.subr.mxu0 0.0
        %2279 = vmatpush1.msra.mxu0 %v2241
        %2280 = vmatprep.subr.mxu0 0.0
        %2281 = vmatpush1.msra.mxu0 %v2240
        %2282 = vmatprep.subr.mxu0 0.0
        %2283 = vmatpush2.msra.mxu0 0.0
        %2284 = vmatprep.subr.mxu0 0.0
        %2285 = vmatpush2.msra.mxu0 0.0
        %2286 = vmatprep.subr.mxu0 0.0
        %2287 = vmatpush2.msra.mxu0 0.0
        %2288 = vmatprep.subr.mxu0 0.0
        %2289 = vmatpush2.msra.mxu0 0.0
        %2290 = vmatprep.subr.mxu0 0.0
        %2291 = vmatpush2.msra.mxu0 0.0
        %2292 = vmatprep.subr.mxu0 0.0
        %2293 = vmatpush2.msra.mxu0 0.0
        %2294 = vmatprep.subr.mxu0 0.0
        %2295 = vmatpush2.msra.mxu0 0.0
        %2296 = vmatprep.subr.mxu0 0.0
        %2297 = vmatpush2.msra.mxu0 0.0
        %2298 = vmatprep.subr.mxu0 0.0
        %2299 = vmatpush2.msra.mxu0 0.0
        %2300 = vmatprep.subr.mxu0 0.0
        %2301 = vmatpush2.msra.mxu0 0.0
        %2302 = vmatprep.subr.mxu0 0.0
        %2303 = vmatpush2.msra.mxu0 0.0
        %2304 = vmatprep.subr.mxu0 0.0
        %2305 = vmatpush2.msra.mxu0 0.0
        %2306 = vmatprep.subr.mxu0 0.0
        %2307 = vmatpush2.msra.mxu0 0.0
        %2308 = vmatprep.subr.mxu0 0.0
        %2309 = vmatpush2.msra.mxu0 0.0
        %2310 = vmatprep.subr.mxu0 0.0
        %2311 = vmatpush2.msra.mxu0 0.0
        %2312 = vmatprep.subr.mxu0 0.0
        %2313 = vmatpush2.msra.mxu0 0.0
        %2314 = vmatprep.mubr.f32.mxu0 0.0
        %2315 = vmatmul.mubr.f32.gmra.mxu0 %v642
        %v2316 = vpop.f32.mrf.mxu0
        %v2317 = vadd.f32 %v2248, %v2316
        %v2318 = vpop.f32.mrf.mxu0
        %2319 = vmatprep.mubr.f32.mxu0 0.0
        %2320 = vmatmul.mubr.f32.gmra.mxu0 %v645
        %v2321 = vpop.f32.mrf.mxu0
        %v2322 = vadd.f32 %v2248, %v2321
        %v2323 = vpop.f32.mrf.mxu0
        %2324 = vmatprep.mubr.f32.mxu0 0.0
        %2325 = vmatmul.mubr.f32.gmra.mxu0 %v648
        %v2326 = vpop.f32.mrf.mxu0
        %v2327 = vadd.f32 %v2248, %v2326
        %v2328 = vpop.f32.mrf.mxu0
        %2329 = vmatprep.mubr.f32.mxu0 0.0
        %2330 = vmatmul.mubr.f32.gmra.mxu0 %v651
        %v2331 = vpop.f32.mrf.mxu0
        %v2332 = vadd.f32 %v2248, %v2331
        %v2333 = vpop.f32.mrf.mxu0
        %2334 = vmatprep.mubr.f32.mxu0 0.0
        %2335 = vmatmul.mubr.f32.gmra.mxu0 %v654
        %v2336 = vpop.f32.mrf.mxu0
        %v2337 = vadd.f32 %v2248, %v2336
        %v2338 = vpop.f32.mrf.mxu0
        %2339 = vmatprep.mubr.f32.mxu0 0.0
        %2340 = vmatmul.mubr.f32.gmra.mxu0 %v657
        %v2341 = vpop.f32.mrf.mxu0
        %v2342 = vadd.f32 %v2248, %v2341
        %v2343 = vpop.f32.mrf.mxu0
        %2344 = vmatprep.mubr.f32.mxu0 0.0
        %2345 = vmatmul.mubr.f32.gmra.mxu0 %v660
        %v2346 = vpop.f32.mrf.mxu0
        %v2347 = vadd.f32 %v2248, %v2346
        %v2348 = vpop.f32.mrf.mxu0
        %2349 = vmatprep.mubr.f32.mxu0 0.0
        %2350 = vmatmul.mubr.f32.gmra.mxu0 %v663
        %v2351 = vpop.f32.mrf.mxu0
        %v2352 = vadd.f32 %v2248, %v2351
        %v2353 = vpop.f32.mrf.mxu0
        %2354 = vmatprep.mubr.f32.mxu0 0.0
        %2355 = vmatmul.mubr.f32.gmra.mxu0 %v666
        %v2356 = vpop.f32.mrf.mxu0
        %v2357 = vadd.f32 %v2248, %v2356
        %v2358 = vpop.f32.mrf.mxu0
        %2359 = vmatprep.mubr.f32.mxu0 0.0
        %2360 = vmatmul.mubr.f32.gmra.mxu0 %v669
        %v2361 = vpop.f32.mrf.mxu0
        %v2362 = vadd.f32 %v2248, %v2361
        %v2363 = vpop.f32.mrf.mxu0
        %2364 = vmatprep.mubr.f32.mxu0 0.0
        %2365 = vmatmul.mubr.f32.gmra.mxu0 %v672
        %v2366 = vpop.f32.mrf.mxu0
        %v2367 = vadd.f32 %v2248, %v2366
        %v2368 = vpop.f32.mrf.mxu0
        %2369 = vmatprep.mubr.f32.mxu0 0.0
        %2370 = vmatmul.mubr.f32.gmra.mxu0 %v675
        %v2371 = vpop.f32.mrf.mxu0
        %v2372 = vadd.f32 %v2248, %v2371
        %v2373 = vpop.f32.mrf.mxu0
        %2374 = vmatprep.mubr.f32.mxu0 0.0
        %2375 = vmatmul.mubr.f32.gmra.mxu0 %v678
        %v2376 = vpop.f32.mrf.mxu0
        %v2377 = vadd.f32 %v2248, %v2376
        %v2378 = vpop.f32.mrf.mxu0
        %2379 = vmatprep.mubr.f32.mxu0 0.0
        %2380 = vmatmul.mubr.f32.gmra.mxu0 %v681
        %v2381 = vpop.f32.mrf.mxu0
        %v2382 = vadd.f32 %v2248, %v2381
        %v2383 = vpop.f32.mrf.mxu0
        %2384 = vmatprep.mubr.f32.mxu0 0.0
        %2385 = vmatmul.mubr.f32.gmra.mxu0 %v684
        %v2386 = vpop.f32.mrf.mxu0
        %v2387 = vadd.f32 %v2248, %v2386
        %v2388 = vpop.f32.mrf.mxu0
        %2389 = vmatprep.mubr.f32.mxu0 0.0
        %2390 = vmatmul.mubr.f32.gmra.mxu0 %v687
        %v2391 = vpop.f32.mrf.mxu0
        %v2392 = vadd.f32 %v2248, %v2391
        %v2393 = vpop.f32.mrf.mxu0
        %2394 = vdwg.mxu0
        %v2395 = vadd.f32 %v2224, %v2317
        %v2396 = vadd.f32 %v2225, %v2322
        %v2397 = vadd.f32 %v2226, %v2327
        %v2398 = vadd.f32 %v2227, %v2332
        %v2399 = vadd.f32 %v2228, %v2337
        %v2400 = vadd.f32 %v2229, %v2342
        %v2401 = vadd.f32 %v2230, %v2347
        %v2402 = vadd.f32 %v2231, %v2352
        %v2403 = vadd.f32 %v2232, %v2357
        %v2404 = vadd.f32 %v2233, %v2362
        %v2405 = vadd.f32 %v2234, %v2367
        %v2406 = vadd.f32 %v2235, %v2372
        %v2407 = vadd.f32 %v2236, %v2377
        %v2408 = vadd.f32 %v2237, %v2382
        %v2409 = vadd.f32 %v2238, %v2387
        %v2410 = vadd.f32 %v2239, %v2392
        %vm2411 = vcmask 392192
        %2412 = vst.msk [vmem:[%s561] sm:$0xff] %vm2411, %v2395
        %2413 = vst.msk [vmem:[%s561 + $0x8] sm:$0xff] %vm2411, %v2396
        %2414 = vst.msk [vmem:[%s561 + $0x10] sm:$0xff] %vm2411, %v2397
        %2415 = vst.msk [vmem:[%s561 + $0x18] sm:$0xff] %vm2411, %v2398
        %2416 = vst.msk [vmem:[%s561 + $0x20] sm:$0xff] %vm2411, %v2399
        %2417 = vst.msk [vmem:[%s561 + $0x28] sm:$0xff] %vm2411, %v2400
        %2418 = vst.msk [vmem:[%s561 + $0x30] sm:$0xff] %vm2411, %v2401
        %2419 = vst.msk [vmem:[%s561 + $0x38] sm:$0xff] %vm2411, %v2402
        %2420 = vst.msk [vmem:[%s561 + $0x40] sm:$0xff] %vm2411, %v2403
        %2421 = vst.msk [vmem:[%s561 + $0x48] sm:$0xff] %vm2411, %v2404
        %2422 = vst.msk [vmem:[%s561 + $0x50] sm:$0xff] %vm2411, %v2405
        %2423 = vst.msk [vmem:[%s561 + $0x58] sm:$0xff] %vm2411, %v2406
        %2424 = vst.msk [vmem:[%s561 + $0x60] sm:$0xff] %vm2411, %v2407
        %2425 = vst.msk [vmem:[%s561 + $0x68] sm:$0xff] %vm2411, %v2408
        %2426 = vst.msk [vmem:[%s561 + $0x70] sm:$0xff] %vm2411, %v2409
        %2427 = vst.msk [vmem:[%s561 + $0x78] sm:$0xff] %vm2411, %v2410
        %s2428 = sand.u32 %s318, 1
        %s2429 = scalar_lea.sflag [#allocation5], %s2428
        %s2430 = sand.u32 %s318, 1
        %s2431 = smul.addr %s2430, 128
        %s2432 = scalar_lea.vmem [#allocation12], %s2431
        // Predicated region
        $region85: #{_lambda_.1} parent=63 // pred_check
          %p2433 = pneg %p328
        $region86: #{_lambda_.1} parent=63 // pred_check_branch
          %2435 = sbr.rel (%p2433) target = $region88
        $region87: #{_lambda_.1} parent=63 // pred_region
          %s2436 = smul.u32 8, %s33
          %s2438 = ssub.s32 2048, 2048
          %2439 = vsyncadd %s2429, %s2438
          %s2440 = smul.addr %s2436, 2
          %s2441 = smul.addr %s32, 32
          %s2442 = sadd.s32 %s2440, %s2441
          %s2443 = smul.addr %s2442, 128
          %s2444 = scalar_lea.hbm %s11, %s2443
          %s2445 = sshll.u32 %s2432, 4
          %s2446 = int_to_ptr.vmem [resolvable:$true] %s2445
          %2451 = dma.vmem_to_hbm [thread:$0]  %s2446, 2048, %s2444, %s2429, 128, 128, 8
        $region88: #{_lambda_.1} parent=63 // pred_fallthru
          _
      $region64: #{_lambda_.1} parent=5 // pred_fallthru
        _
      %p2452 = scmp.le.s32.totalorder 2, %s23
      // Predicated region
      $region89: #{_lambda_.1} parent=5 // pred_check
        %p2453 = pneg %p2452
      $region90: #{_lambda_.1} parent=5 // pred_check_branch
        %2455 = sbr.rel (%p2453) target = $region92
      $region91: #{_lambda_.1} parent=5 // pred_region
        %s2456 = ssub.s32 %s23, 2
        // Predicated region
        $region93: #{_lambda_.1} parent=91 // pred_check
          %p2457 = pneg %p334
        $region94: #{_lambda_.1} parent=91 // pred_check_branch
          %2459 = sbr.rel (%p2457) target = $region96
        $region95: #{_lambda_.1} parent=91 // pred_region
          %s2460 = sand.u32 %s319, 1
          %s2461 = scalar_lea.sflag [#allocation5], %s2460
          %s2462 = sand.u32 %s319, 1
          %s2463 = smul.addr %s2462, 128
          %s2464 = scalar_lea.vmem [#allocation12], %s2463
          %2465 = dma.done %s2461, 2048
        $region96: #{_lambda_.1} parent=91 // pred_fallthru
          _
      $region92: #{_lambda_.1} parent=5 // pred_fallthru
        _
    $region6: #{_lambda_.1} parent=1 // loop_footer
      %s27 = sadd.s32 1, %s23
    $region7: #{_lambda_.1} parent=1 // loop_footer_branch
      %22 = sbr.rel target = $region3
    $region8: #{_lambda_.1} parent=1 // loop_exit
      _
    %2466 = vsyncpa [#allocation4], 1
    %s2467 = scalar_lea.sflag [#allocation4], 1
    %2468 = vsyncpa %s2467, 1
    %2469 = vsyncpa [#allocation7], 1
    %2470 = vsyncpa [#allocation10], 1
    %2471 = vsyncpa [#allocation5], 1
    %s2472 = scalar_lea.sflag [#allocation5], 1
    %2473 = vsyncpa %s2472, 1

</llo_original>
